<compile_context>
chip_gen: v5e
topology: v5e:2x2
jax: 0.10.0
libtpu: 0.0.40
codegen_flags: <defaults>
</compile_context>

<pallas_src>
import jax
import jax.numpy as jnp
from jax.experimental import pallas as pl
from jax.experimental.pallas import tpu as pltpu

FRAME = 8      # conv feature-extractor kernel == stride (downsample factor)
HIDDEN = 128   # encoder model size (lane-dense: full 128-lane vregs)
FFN = 256      # feed-forward inner dim (lane-dense)
NLAYERS = 2    # synthetic encoder depth

# Packed per-layer vector slab: column offsets (all multiples of 128 lanes).
BQKV_OFF = 0                          # (3H,) fused QKV bias (q-part pre-scaled)
BO_OFF = BQKV_OFF + 3 * HIDDEN        # (H,)  attention output bias
G1_OFF = BO_OFF + HIDDEN              # (H,)  LN1 gamma
E1_OFF = G1_OFF + HIDDEN              # (H,)  LN1 beta
G2_OFF = E1_OFF + HIDDEN              # (H,)  LN2 gamma
E2_OFF = G2_OFF + HIDDEN              # (H,)  LN2 beta
B1_OFF = E2_OFF + HIDDEN              # (FFN,) FFN bias 1
B2_OFF = B1_OFF + FFN                 # (H,)  FFN bias 2
VEC_W = B2_OFF + HIDDEN               # = 1408 total columns


# ----------------------------------------------------------------------------
# Fused per-utterance kernel: conv front-end + NLAYERS pre-LN transformer layers
# ----------------------------------------------------------------------------
def _layernorm(x, g, b):
    mu = jnp.mean(x, axis=-1, keepdims=True)
    xc = x - mu
    var = jnp.mean(xc * xc, axis=-1, keepdims=True)
    return xc * jax.lax.rsqrt(var + 1e-5) * g + b


def _xeus_kernel(lens_ref,                 # scalar prefetch: (B,) int32 in SMEM
                 frames_ref,               # (T', FRAME) f32 — this batch's frames
                 fe_ref,                   # (FRAME+1, H) f32: conv weights + bias row
                 wqkv_ref,                 # (L, H, 3H) bf16 (1/sqrt(d) folded in Wq)
                 wo_ref,                   # (L, H, H)  bf16
                 w1_ref,                   # (L, H, FFN) bf16
                 w2_ref,                   # (L, FFN, H) bf16
                 vec_ref,                  # (L, VEC_W) f32 packed biases / LN params
                 o_ref):                   # (T', H) f32 — this batch's context column
    H = HIDDEN
    tp = frames_ref.shape[0]
    neg_inf = jnp.float32(-1e9)
    length = lens_ref[pl.program_id(0)]    # valid frame count for this utterance

    def vec(l, lo, hi):                    # (1, hi-lo) f32 slice of the packed slab
        return vec_ref[l:l + 1, lo:hi]

    # --- conv feature extractor (kernel == stride): FRAME broadcast-FMAs, f32 ---
    fr = frames_ref[...]                                       # (T', FRAME) f32
    h = fe_ref[FRAME:FRAME + 1, :] + fr[:, 0:1] * fe_ref[0:1, :]
    for j in range(1, FRAME):
        h = h + fr[:, j:j + 1] * fe_ref[j:j + 1, :]
    # TODO(synk): torch nn.GELU defaults to exact erf; tanh approximation here.
    h = jax.nn.gelu(h, approximate=True)                       # (T', H) f32

    # key-padding mask, computed once (shared by every layer)
    kidx = jax.lax.broadcasted_iota(jnp.int32, (tp, tp), 1)
    kmask = kidx < length                                       # (T', T') bool

    for l in range(NLAYERS):
        # --- self attention (pre-LN, single head, fused QKV, scale in Wq) ---
        hn = _layernorm(h, vec(l, G1_OFF, G1_OFF + H), vec(l, E1_OFF, E1_OFF + H))
        qkv = (jnp.dot(hn.astype(jnp.bfloat16), wqkv_ref[l],
                       preferred_element_type=jnp.float32)
               + vec(l, BQKV_OFF, BQKV_OFF + 3 * H)).astype(jnp.bfloat16)
        q = qkv[:, 0:H]
        k = qkv[:, H:2 * H]
        v = qkv[:, 2 * H:3 * H]

        s = jax.lax.dot_general(q, k, (((1,), (1,)), ((), ())),
                                preferred_element_type=jnp.float32)   # (T', T')
        s = jnp.where(kmask, s, neg_inf)
        s = s - jnp.max(s, axis=-1, keepdims=True)
        p = jnp.exp(s)
        p = p * pl.reciprocal(jnp.sum(p, axis=-1, keepdims=True), approx=True)

        attn = jnp.dot(p.astype(jnp.bfloat16), v,
                       preferred_element_type=jnp.float32)            # (T', H) f32
        ao = jnp.dot(attn.astype(jnp.bfloat16), wo_ref[l],
                     preferred_element_type=jnp.float32) + vec(l, BO_OFF, BO_OFF + H)
        h = h + ao                                                    # residual 1

        # --- feed forward ---
        hn2 = _layernorm(h, vec(l, G2_OFF, G2_OFF + H), vec(l, E2_OFF, E2_OFF + H))
        f = jnp.dot(hn2.astype(jnp.bfloat16), w1_ref[l],
                    preferred_element_type=jnp.float32) + vec(l, B1_OFF, B1_OFF + FFN)
        f = jax.nn.gelu(f, approximate=True)
        f = jnp.dot(f.astype(jnp.bfloat16), w2_ref[l],
                    preferred_element_type=jnp.float32) + vec(l, B2_OFF, B2_OFF + H)
        h = h + f                                                     # residual 2

    o_ref[...] = h   # lane-dense 128-wide unmasked store into this batch's column


def xeus_encoder(frames, out_lengths, params, batch, tp):
    """frames: (B*T', FRAME) f32; out_lengths: (B,) int32. Returns (T', B*H) f32."""
    H, Fd, L = HIDDEN, FFN, NLAYERS

    def w2(shape):
        return pl.BlockSpec(shape, lambda b, lens: (0, 0))

    def w3(shape):
        return pl.BlockSpec(shape, lambda b, lens: (0, 0, 0))

    grid_spec = pltpu.PrefetchScalarGridSpec(
        num_scalar_prefetch=1,
        grid=(batch,),
        in_specs=[
            pl.BlockSpec((tp, FRAME), lambda b, lens: (b, 0)),   # this batch's frames
            w2((FRAME + 1, H)),                                  # conv weights+bias
            w3((L, H, 3 * H)),                                   # wqkv
            w3((L, H, H)),                                       # wo
            w3((L, H, Fd)),                                      # w1
            w3((L, Fd, H)),                                      # w2
            w2((L, VEC_W)),                                      # packed biases / LN
        ],
        out_specs=pl.BlockSpec((tp, H), lambda b, lens: (0, b)),
    )

    return pl.pallas_call(
        _xeus_kernel,
        out_shape=jax.ShapeDtypeStruct((tp, batch * H), jnp.float32),
        grid_spec=grid_spec,
        compiler_params=pltpu.CompilerParams(
            dimension_semantics=("parallel",),        # v7x: 2nd TC takes other batches
            vmem_limit_bytes=32 * 1024 * 1024),
    )(out_lengths, frames,
      params["fe"], params["wqkv"], params["wo"],
      params["w1"], params["w2"], params["vecs"])


# ----------------------------------------------------------------------------
# Parameters (deterministic synthetic init — no checkpoint load)
# ----------------------------------------------------------------------------
def init_params(key):
    # TODO(synk): real XEUS weights come from SSLTask.build_model_from_file;
    # deterministic random stand-ins with the same interface are used instead.
    keys = jax.random.split(key, 1 + NLAYERS)

    def rnd(k, shape, scale):
        return jax.random.normal(k, shape, jnp.float32) * scale

    H, Fd, L = HIDDEN, FFN, NLAYERS
    scale = 1.0 / jnp.sqrt(jnp.float32(H))   # attention scale, folded into Wq / bq

    wqkv, wo, w1, w2 = [], [], [], []
    for l in range(L):
        kk = jax.random.split(keys[1 + l], 6)
        wq = rnd(kk[0], (H, H), 0.1) * scale
        wk = rnd(kk[1], (H, H), 0.1)
        wv = rnd(kk[2], (H, H), 0.1)
        wqkv.append(jnp.concatenate([wq, wk, wv], axis=-1))
        wo.append(rnd(kk[3], (H, H), 0.1))
        w1.append(rnd(kk[4], (H, Fd), 0.1))
        w2.append(rnd(kk[5], (Fd, H), 0.1))

    # conv front-end table: rows 0..FRAME-1 weights, row FRAME bias (kept f32).
    fe = jnp.concatenate([rnd(keys[0], (FRAME, H), 0.25),
                          jnp.zeros((1, H), jnp.float32)], axis=0)

    # packed per-layer vector slab (column layout must match *_OFF constants).
    # q-bias carries the 1/sqrt(d) factor like Wq (zero here, but kept explicit).
    bq = jnp.zeros((L, H), jnp.float32) * scale
    vecs = jnp.concatenate([
        bq,                                   # bqkv (q part)
        jnp.zeros((L, 2 * H), jnp.float32),   # bqkv (k, v parts)
        jnp.zeros((L, H), jnp.float32),       # bo
        jnp.ones((L, H), jnp.float32),        # g1
        jnp.zeros((L, H), jnp.float32),       # e1
        jnp.ones((L, H), jnp.float32),        # g2
        jnp.zeros((L, H), jnp.float32),       # e2
        jnp.zeros((L, Fd), jnp.float32),      # b1
        jnp.zeros((L, H), jnp.float32),       # b2
    ], axis=-1)
    assert vecs.shape == (L, VEC_W)

    return {
        "fe": fe,                                        # (FRAME+1, H) f32
        "wqkv": jnp.stack(wqkv).astype(jnp.bfloat16),    # (L, H, 3H)
        "wo": jnp.stack(wo).astype(jnp.bfloat16),        # (L, H, H)
        "w1": jnp.stack(w1).astype(jnp.bfloat16),        # (L, H, FFN)
        "w2": jnp.stack(w2).astype(jnp.bfloat16),        # (L, FFN, H)
        "vecs": vecs,                                    # (L, VEC_W) f32
    }


# ----------------------------------------------------------------------------
# Xeus.forward equivalent
# ----------------------------------------------------------------------------
def xeus_forward(inp, params):
    """inp: float32 [B, T, 2]; channel 0 = validity flag (0 => padded),
    channel 1 = waveform sample (mirrors the torch narrow/squeeze logic)."""
    # --- wrapper glue (matches torch code exactly) ---
    long_mask = (inp[:, :, 0] == 0).astype(jnp.int32)            # 1 where padded
    source = inp[:, :, 1]                                        # [B, T] waveform
    input_lengths = jnp.sum(1 - long_mask, axis=1)               # [B]

    B, T = source.shape
    Tp = T // FRAME

    # --- wav2vec_encoder.encode(...): fused conv front-end + transformer ---
    frames = source[:, : Tp * FRAME].reshape(B * Tp, FRAME)
    out_lengths = (input_lengths // FRAME).astype(jnp.int32)     # conv length rule

    ctx2d = xeus_encoder(frames, out_lengths, params, B, Tp)     # (T', B*H) f32
    context = ctx2d.reshape(Tp, B, HIDDEN)                       # free reshape: [T', B, H]

    # --- wrapper glue after encode (matches torch code) ---
    frame_idx = jnp.arange(Tp)[None, :]
    valid = frame_idx < out_lengths[:, None]                     # [B, T'] True = valid
    dec_attn_mask = (1 - valid.astype(jnp.int32)).astype(jnp.uint8)   # 1 = pad

    return {
        "source": source,
        "context": context,
        "src_mask": dec_attn_mask,
        "src": dec_attn_mask,
        "pos_emb": None,
        "wav2vec_context": context,
        "wav2vec_padding_mask": dec_attn_mask,
        "enc_pred_lang": None,
    }


if __name__ == "__main__":
    key = jax.random.PRNGKey(0)
    k_p, k_w = jax.random.split(key)

    B, T = 2, 128
    params = init_params(k_p)

    # build [B, T, 2] input: channel 0 = validity flag, channel 1 = waveform
    wave = jax.random.normal(k_w, (B, T), jnp.float32)
    lengths = jnp.array([128, 96], jnp.int32)
    flag = (jnp.arange(T)[None, :] < lengths[:, None]).astype(jnp.float32)
    wave = wave * flag
    inp = jnp.stack([flag, wave], axis=-1)                       # [2, 128, 2]

    fwd = jax.jit(xeus_forward)
    out = fwd(inp, params)
    jax.block_until_ready(out["context"])
    jax.block_until_ready(out["src_mask"])

    assert out["context"].shape == (T // FRAME, B, HIDDEN)
    assert out["src_mask"].shape == (B, T // FRAME)
    assert out["src_mask"].dtype == jnp.uint8
    print("KERNEL_OK")
</pallas_src>

<mosaic_0001>
module attributes {stable_mosaic.version = 11 : i64} {
  func.func @_xeus_kernel(%arg0: i32, %arg1: memref<2xi32, #tpu.memory_space<smem>>, %arg2: memref<16x8xf32, #tpu.memory_space<vmem>>, %arg3: memref<9x128xf32, #tpu.memory_space<vmem>>, %arg4: memref<2x128x384xbf16, #tpu.memory_space<vmem>>, %arg5: memref<2x128x128xbf16, #tpu.memory_space<vmem>>, %arg6: memref<2x128x256xbf16, #tpu.memory_space<vmem>>, %arg7: memref<2x256x128xbf16, #tpu.memory_space<vmem>>, %arg8: memref<2x1408xf32, #tpu.memory_space<vmem>>, %arg9: memref<16x128xf32, #tpu.memory_space<vmem>>) attributes {dimension_semantics = [#tpu.dimension_semantics<parallel>], iteration_bounds = array<i64: 2>, scalar_prefetch = 1 : i64, scratch_operands = 0 : i64, tpu.core_type = #tpu.core_type<tc>, window_params = [{transform_indices = @transform_0, window_bounds = array<i64: 16, 8>}, {pipeline_mode = #tpu.pipeline_mode<synchronous>, transform_indices = @transform_1, window_bounds = array<i64: 9, 128>}, {pipeline_mode = #tpu.pipeline_mode<synchronous>, transform_indices = @transform_2, window_bounds = array<i64: 2, 128, 384>}, {pipeline_mode = #tpu.pipeline_mode<synchronous>, transform_indices = @transform_3, window_bounds = array<i64: 2, 128, 128>}, {pipeline_mode = #tpu.pipeline_mode<synchronous>, transform_indices = @transform_4, window_bounds = array<i64: 2, 128, 256>}, {pipeline_mode = #tpu.pipeline_mode<synchronous>, transform_indices = @transform_5, window_bounds = array<i64: 2, 256, 128>}, {pipeline_mode = #tpu.pipeline_mode<synchronous>, transform_indices = @transform_6, window_bounds = array<i64: 2, 1408>}, {transform_indices = @transform_7, window_bounds = array<i64: 16, 128>}]} {
    %0 = arith.index_cast %arg0 : i32 to index
    %1 = memref.load %arg1[%0] : memref<2xi32, #tpu.memory_space<smem>>
    %c0 = arith.constant 0 : index
    %c0_0 = arith.constant 0 : index
    %2 = vector.load %arg2[%c0, %c0_0] : memref<16x8xf32, #tpu.memory_space<vmem>>, vector<16x8xf32>
    %c8 = arith.constant 8 : index
    %c0_1 = arith.constant 0 : index
    %3 = vector.load %arg3[%c8, %c0_1] : memref<9x128xf32, #tpu.memory_space<vmem>>, vector<1x128xf32>
    %4 = vector.extract_strided_slice %2 {offsets = [0, 0], sizes = [16, 1], strides = [1, 1]} : vector<16x8xf32> to vector<16x1xf32>
    %c0_2 = arith.constant 0 : index
    %c0_3 = arith.constant 0 : index
    %5 = vector.load %arg3[%c0_2, %c0_3] : memref<9x128xf32, #tpu.memory_space<vmem>>, vector<1x128xf32>
    %6 = vector.broadcast %4 : vector<16x1xf32> to vector<16x128xf32>
    %7 = vector.broadcast %5 : vector<1x128xf32> to vector<16x128xf32>
    %8 = arith.mulf %6, %7 : vector<16x128xf32>
    %9 = vector.broadcast %3 : vector<1x128xf32> to vector<16x128xf32>
    %10 = arith.addf %9, %8 : vector<16x128xf32>
    %11 = vector.extract_strided_slice %2 {offsets = [0, 1], sizes = [16, 1], strides = [1, 1]} : vector<16x8xf32> to vector<16x1xf32>
    %c1 = arith.constant 1 : index
    %c0_4 = arith.constant 0 : index
    %12 = vector.load %arg3[%c1, %c0_4] : memref<9x128xf32, #tpu.memory_space<vmem>>, vector<1x128xf32>
    %13 = vector.broadcast %11 : vector<16x1xf32> to vector<16x128xf32>
    %14 = vector.broadcast %12 : vector<1x128xf32> to vector<16x128xf32>
    %15 = arith.mulf %13, %14 : vector<16x128xf32>
    %16 = arith.addf %10, %15 : vector<16x128xf32>
    %17 = vector.extract_strided_slice %2 {offsets = [0, 2], sizes = [16, 1], strides = [1, 1]} : vector<16x8xf32> to vector<16x1xf32>
    %c2 = arith.constant 2 : index
    %c0_5 = arith.constant 0 : index
    %18 = vector.load %arg3[%c2, %c0_5] : memref<9x128xf32, #tpu.memory_space<vmem>>, vector<1x128xf32>
    %19 = vector.broadcast %17 : vector<16x1xf32> to vector<16x128xf32>
    %20 = vector.broadcast %18 : vector<1x128xf32> to vector<16x128xf32>
    %21 = arith.mulf %19, %20 : vector<16x128xf32>
    %22 = arith.addf %16, %21 : vector<16x128xf32>
    %23 = vector.extract_strided_slice %2 {offsets = [0, 3], sizes = [16, 1], strides = [1, 1]} : vector<16x8xf32> to vector<16x1xf32>
    %c3 = arith.constant 3 : index
    %c0_6 = arith.constant 0 : index
    %24 = vector.load %arg3[%c3, %c0_6] : memref<9x128xf32, #tpu.memory_space<vmem>>, vector<1x128xf32>
    %25 = vector.broadcast %23 : vector<16x1xf32> to vector<16x128xf32>
    %26 = vector.broadcast %24 : vector<1x128xf32> to vector<16x128xf32>
    %27 = arith.mulf %25, %26 : vector<16x128xf32>
    %28 = arith.addf %22, %27 : vector<16x128xf32>
    %29 = vector.extract_strided_slice %2 {offsets = [0, 4], sizes = [16, 1], strides = [1, 1]} : vector<16x8xf32> to vector<16x1xf32>
    %c4 = arith.constant 4 : index
    %c0_7 = arith.constant 0 : index
    %30 = vector.load %arg3[%c4, %c0_7] : memref<9x128xf32, #tpu.memory_space<vmem>>, vector<1x128xf32>
    %31 = vector.broadcast %29 : vector<16x1xf32> to vector<16x128xf32>
    %32 = vector.broadcast %30 : vector<1x128xf32> to vector<16x128xf32>
    %33 = arith.mulf %31, %32 : vector<16x128xf32>
    %34 = arith.addf %28, %33 : vector<16x128xf32>
    %35 = vector.extract_strided_slice %2 {offsets = [0, 5], sizes = [16, 1], strides = [1, 1]} : vector<16x8xf32> to vector<16x1xf32>
    %c5 = arith.constant 5 : index
    %c0_8 = arith.constant 0 : index
    %36 = vector.load %arg3[%c5, %c0_8] : memref<9x128xf32, #tpu.memory_space<vmem>>, vector<1x128xf32>
    %37 = vector.broadcast %35 : vector<16x1xf32> to vector<16x128xf32>
    %38 = vector.broadcast %36 : vector<1x128xf32> to vector<16x128xf32>
    %39 = arith.mulf %37, %38 : vector<16x128xf32>
    %40 = arith.addf %34, %39 : vector<16x128xf32>
    %41 = vector.extract_strided_slice %2 {offsets = [0, 6], sizes = [16, 1], strides = [1, 1]} : vector<16x8xf32> to vector<16x1xf32>
    %c6 = arith.constant 6 : index
    %c0_9 = arith.constant 0 : index
    %42 = vector.load %arg3[%c6, %c0_9] : memref<9x128xf32, #tpu.memory_space<vmem>>, vector<1x128xf32>
    %43 = vector.broadcast %41 : vector<16x1xf32> to vector<16x128xf32>
    %44 = vector.broadcast %42 : vector<1x128xf32> to vector<16x128xf32>
    %45 = arith.mulf %43, %44 : vector<16x128xf32>
    %46 = arith.addf %40, %45 : vector<16x128xf32>
    %47 = vector.extract_strided_slice %2 {offsets = [0, 7], sizes = [16, 1], strides = [1, 1]} : vector<16x8xf32> to vector<16x1xf32>
    %c7 = arith.constant 7 : index
    %c0_10 = arith.constant 0 : index
    %48 = vector.load %arg3[%c7, %c0_10] : memref<9x128xf32, #tpu.memory_space<vmem>>, vector<1x128xf32>
    %49 = vector.broadcast %47 : vector<16x1xf32> to vector<16x128xf32>
    %50 = vector.broadcast %48 : vector<1x128xf32> to vector<16x128xf32>
    %51 = arith.mulf %49, %50 : vector<16x128xf32>
    %52 = arith.addf %46, %51 : vector<16x128xf32>
    %53 = arith.mulf %52, %52 : vector<16x128xf32>
    %54 = arith.mulf %52, %53 : vector<16x128xf32>
    %cst = arith.constant 4.471500e-02 : f32
    %55 = vector.broadcast %cst : f32 to vector<16x128xf32>
    %56 = arith.mulf %55, %54 : vector<16x128xf32>
    %57 = arith.addf %52, %56 : vector<16x128xf32>
    %cst_11 = arith.constant 0.797884583 : f32
    %58 = vector.broadcast %cst_11 : f32 to vector<16x128xf32>
    %59 = arith.mulf %58, %57 : vector<16x128xf32>
    %60 = math.tanh %59 : vector<16x128xf32>
    %cst_12 = arith.constant 1.000000e+00 : f32
    %61 = vector.broadcast %cst_12 : f32 to vector<16x128xf32>
    %62 = arith.addf %61, %60 : vector<16x128xf32>
    %cst_13 = arith.constant 5.000000e-01 : f32
    %63 = vector.broadcast %cst_13 : f32 to vector<16x128xf32>
    %64 = arith.mulf %63, %62 : vector<16x128xf32>
    %65 = arith.mulf %52, %64 : vector<16x128xf32>
    %66 = tpu.iota {dimensions = array<i32: 1>} : vector<16x16xi32>
    %67 = vector.broadcast %1 : i32 to vector<16x16xi32>
    %68 = arith.cmpi slt, %66, %67 : vector<16x16xi32>
    %c0_14 = arith.constant 0 : index
    %c512 = arith.constant 512 : index
    %69 = vector.load %arg8[%c0_14, %c512] : memref<2x1408xf32, #tpu.memory_space<vmem>>, vector<1x128xf32>
    %c0_15 = arith.constant 0 : index
    %c640 = arith.constant 640 : index
    %70 = vector.load %arg8[%c0_15, %c640] : memref<2x1408xf32, #tpu.memory_space<vmem>>, vector<1x128xf32>
    %cst_16 = arith.constant dense<0.000000e+00> : vector<16xf32>
    %71 = vector.multi_reduction <add>, %65, %cst_16 [1] : vector<16x128xf32> to vector<16xf32>
    %72 = vector.shape_cast %71 : vector<16xf32> to vector<16x1xf32>
    %cst_17 = arith.constant 1.280000e+02 : f32
    %73 = vector.broadcast %cst_17 : f32 to vector<16x1xf32>
    %74 = arith.divf %72, %73 : vector<16x1xf32>
    %75 = vector.broadcast %74 : vector<16x1xf32> to vector<16x128xf32>
    %76 = arith.subf %65, %75 : vector<16x128xf32>
    %77 = arith.mulf %76, %76 : vector<16x128xf32>
    %cst_18 = arith.constant dense<0.000000e+00> : vector<16xf32>
    %78 = vector.multi_reduction <add>, %77, %cst_18 [1] : vector<16x128xf32> to vector<16xf32>
    %79 = vector.shape_cast %78 : vector<16xf32> to vector<16x1xf32>
    %cst_19 = arith.constant 1.280000e+02 : f32
    %80 = vector.broadcast %cst_19 : f32 to vector<16x1xf32>
    %81 = arith.divf %79, %80 : vector<16x1xf32>
    %cst_20 = arith.constant 9.99999974E-6 : f32
    %82 = vector.broadcast %cst_20 : f32 to vector<16x1xf32>
    %83 = arith.addf %81, %82 : vector<16x1xf32>
    %84 = math.rsqrt %83 : vector<16x1xf32>
    %85 = vector.broadcast %84 : vector<16x1xf32> to vector<16x128xf32>
    %86 = arith.mulf %76, %85 : vector<16x128xf32>
    %87 = vector.broadcast %69 : vector<1x128xf32> to vector<16x128xf32>
    %88 = arith.mulf %86, %87 : vector<16x128xf32>
    %89 = vector.broadcast %70 : vector<1x128xf32> to vector<16x128xf32>
    %90 = arith.addf %88, %89 : vector<16x128xf32>
    %91 = arith.truncf %90 : vector<16x128xf32> to vector<16x128xbf16>
    %c0_21 = arith.constant 0 : index
    %c0_22 = arith.constant 0 : index
    %c0_23 = arith.constant 0 : index
    %92 = vector.load %arg4[%c0_21, %c0_22, %c0_23] : memref<2x128x384xbf16, #tpu.memory_space<vmem>>, vector<1x128x384xbf16>
    %93 = vector.shape_cast %92 : vector<1x128x384xbf16> to vector<128x384xbf16>
    %cst_24 = arith.constant dense<0.000000e+00> : vector<16x384xf32>
    %94 = tpu.matmul %91, %93, %cst_24 {dimension_numbers = #tpu.dot_dimension_numbers<[1], [0], [0], [1], [0, 0, 1, 1], [], []>} : vector<16x128xbf16>, vector<128x384xbf16>, vector<16x384xf32> -> vector<16x384xf32>
    %c0_25 = arith.constant 0 : index
    %c0_26 = arith.constant 0 : index
    %95 = vector.load %arg8[%c0_25, %c0_26] : memref<2x1408xf32, #tpu.memory_space<vmem>>, vector<1x384xf32>
    %96 = vector.broadcast %95 : vector<1x384xf32> to vector<16x384xf32>
    %97 = arith.addf %94, %96 : vector<16x384xf32>
    %98 = arith.truncf %97 : vector<16x384xf32> to vector<16x384xbf16>
    %99 = vector.extract_strided_slice %98 {offsets = [0, 0], sizes = [16, 128], strides = [1, 1]} : vector<16x384xbf16> to vector<16x128xbf16>
    %100 = vector.extract_strided_slice %98 {offsets = [0, 128], sizes = [16, 128], strides = [1, 1]} : vector<16x384xbf16> to vector<16x128xbf16>
    %101 = vector.extract_strided_slice %98 {offsets = [0, 256], sizes = [16, 128], strides = [1, 1]} : vector<16x384xbf16> to vector<16x128xbf16>
    %cst_27 = arith.constant dense<0.000000e+00> : vector<16x16xf32>
    %102 = tpu.matmul %99, %100, %cst_27 {dimension_numbers = #tpu.dot_dimension_numbers<[1], [1], [0], [0], [0, 0, 1, 0], [], []>} : vector<16x128xbf16>, vector<16x128xbf16>, vector<16x16xf32> -> vector<16x16xf32>
    %cst_28 = arith.constant -1.000000e+09 : f32
    %103 = vector.broadcast %cst_28 : f32 to vector<16x16xf32>
    %104 = arith.select %68, %102, %103 : vector<16x16xi1>, vector<16x16xf32>
    %cst_29 = arith.constant dense<0xFF800000> : vector<16xf32>
    %105 = vector.multi_reduction <maximumf>, %104, %cst_29 [1] : vector<16x16xf32> to vector<16xf32>
    %106 = vector.shape_cast %105 : vector<16xf32> to vector<16x1xf32>
    %107 = vector.broadcast %106 : vector<16x1xf32> to vector<16x16xf32>
    %108 = arith.subf %104, %107 : vector<16x16xf32>
    %109 = math.exp %108 : vector<16x16xf32>
    %cst_30 = arith.constant dense<0.000000e+00> : vector<16xf32>
    %110 = vector.multi_reduction <add>, %109, %cst_30 [1] : vector<16x16xf32> to vector<16xf32>
    %111 = vector.shape_cast %110 : vector<16xf32> to vector<16x1xf32>
    %112 = tpu.reciprocal %111 {approx = true} : vector<16x1xf32> -> vector<16x1xf32>
    %113 = vector.broadcast %112 : vector<16x1xf32> to vector<16x16xf32>
    %114 = arith.mulf %109, %113 : vector<16x16xf32>
    %115 = arith.truncf %114 : vector<16x16xf32> to vector<16x16xbf16>
    %cst_31 = arith.constant dense<0.000000e+00> : vector<16x128xf32>
    %116 = tpu.matmul %115, %101, %cst_31 {dimension_numbers = #tpu.dot_dimension_numbers<[1], [0], [0], [1], [0, 0, 1, 1], [], []>} : vector<16x16xbf16>, vector<16x128xbf16>, vector<16x128xf32> -> vector<16x128xf32>
    %117 = arith.truncf %116 : vector<16x128xf32> to vector<16x128xbf16>
    %c0_32 = arith.constant 0 : index
    %c0_33 = arith.constant 0 : index
    %c0_34 = arith.constant 0 : index
    %118 = vector.load %arg5[%c0_32, %c0_33, %c0_34] : memref<2x128x128xbf16, #tpu.memory_space<vmem>>, vector<1x128x128xbf16>
    %119 = vector.shape_cast %118 : vector<1x128x128xbf16> to vector<128x128xbf16>
    %cst_35 = arith.constant dense<0.000000e+00> : vector<16x128xf32>
    %120 = tpu.matmul %117, %119, %cst_35 {dimension_numbers = #tpu.dot_dimension_numbers<[1], [0], [0], [1], [0, 0, 1, 1], [], []>} : vector<16x128xbf16>, vector<128x128xbf16>, vector<16x128xf32> -> vector<16x128xf32>
    %c0_36 = arith.constant 0 : index
    %c384 = arith.constant 384 : index
    %121 = vector.load %arg8[%c0_36, %c384] : memref<2x1408xf32, #tpu.memory_space<vmem>>, vector<1x128xf32>
    %122 = vector.broadcast %121 : vector<1x128xf32> to vector<16x128xf32>
    %123 = arith.addf %120, %122 : vector<16x128xf32>
    %124 = arith.addf %65, %123 : vector<16x128xf32>
    %c0_37 = arith.constant 0 : index
    %c768 = arith.constant 768 : index
    %125 = vector.load %arg8[%c0_37, %c768] : memref<2x1408xf32, #tpu.memory_space<vmem>>, vector<1x128xf32>
    %c0_38 = arith.constant 0 : index
    %c896 = arith.constant 896 : index
    %126 = vector.load %arg8[%c0_38, %c896] : memref<2x1408xf32, #tpu.memory_space<vmem>>, vector<1x128xf32>
    %cst_39 = arith.constant dense<0.000000e+00> : vector<16xf32>
    %127 = vector.multi_reduction <add>, %124, %cst_39 [1] : vector<16x128xf32> to vector<16xf32>
    %128 = vector.shape_cast %127 : vector<16xf32> to vector<16x1xf32>
    %cst_40 = arith.constant 1.280000e+02 : f32
    %129 = vector.broadcast %cst_40 : f32 to vector<16x1xf32>
    %130 = arith.divf %128, %129 : vector<16x1xf32>
    %131 = vector.broadcast %130 : vector<16x1xf32> to vector<16x128xf32>
    %132 = arith.subf %124, %131 : vector<16x128xf32>
    %133 = arith.mulf %132, %132 : vector<16x128xf32>
    %cst_41 = arith.constant dense<0.000000e+00> : vector<16xf32>
    %134 = vector.multi_reduction <add>, %133, %cst_41 [1] : vector<16x128xf32> to vector<16xf32>
    %135 = vector.shape_cast %134 : vector<16xf32> to vector<16x1xf32>
    %cst_42 = arith.constant 1.280000e+02 : f32
    %136 = vector.broadcast %cst_42 : f32 to vector<16x1xf32>
    %137 = arith.divf %135, %136 : vector<16x1xf32>
    %cst_43 = arith.constant 9.99999974E-6 : f32
    %138 = vector.broadcast %cst_43 : f32 to vector<16x1xf32>
    %139 = arith.addf %137, %138 : vector<16x1xf32>
    %140 = math.rsqrt %139 : vector<16x1xf32>
    %141 = vector.broadcast %140 : vector<16x1xf32> to vector<16x128xf32>
    %142 = arith.mulf %132, %141 : vector<16x128xf32>
    %143 = vector.broadcast %125 : vector<1x128xf32> to vector<16x128xf32>
    %144 = arith.mulf %142, %143 : vector<16x128xf32>
    %145 = vector.broadcast %126 : vector<1x128xf32> to vector<16x128xf32>
    %146 = arith.addf %144, %145 : vector<16x128xf32>
    %147 = arith.truncf %146 : vector<16x128xf32> to vector<16x128xbf16>
    %c0_44 = arith.constant 0 : index
    %c0_45 = arith.constant 0 : index
    %c0_46 = arith.constant 0 : index
    %148 = vector.load %arg6[%c0_44, %c0_45, %c0_46] : memref<2x128x256xbf16, #tpu.memory_space<vmem>>, vector<1x128x256xbf16>
    %149 = vector.shape_cast %148 : vector<1x128x256xbf16> to vector<128x256xbf16>
    %cst_47 = arith.constant dense<0.000000e+00> : vector<16x256xf32>
    %150 = tpu.matmul %147, %149, %cst_47 {dimension_numbers = #tpu.dot_dimension_numbers<[1], [0], [0], [1], [0, 0, 1, 1], [], []>} : vector<16x128xbf16>, vector<128x256xbf16>, vector<16x256xf32> -> vector<16x256xf32>
    %c0_48 = arith.constant 0 : index
    %c1024 = arith.constant 1024 : index
    %151 = vector.load %arg8[%c0_48, %c1024] : memref<2x1408xf32, #tpu.memory_space<vmem>>, vector<1x256xf32>
    %152 = vector.broadcast %151 : vector<1x256xf32> to vector<16x256xf32>
    %153 = arith.addf %150, %152 : vector<16x256xf32>
    %154 = arith.mulf %153, %153 : vector<16x256xf32>
    %155 = arith.mulf %153, %154 : vector<16x256xf32>
    %cst_49 = arith.constant 4.471500e-02 : f32
    %156 = vector.broadcast %cst_49 : f32 to vector<16x256xf32>
    %157 = arith.mulf %156, %155 : vector<16x256xf32>
    %158 = arith.addf %153, %157 : vector<16x256xf32>
    %cst_50 = arith.constant 0.797884583 : f32
    %159 = vector.broadcast %cst_50 : f32 to vector<16x256xf32>
    %160 = arith.mulf %159, %158 : vector<16x256xf32>
    %161 = math.tanh %160 : vector<16x256xf32>
    %cst_51 = arith.constant 1.000000e+00 : f32
    %162 = vector.broadcast %cst_51 : f32 to vector<16x256xf32>
    %163 = arith.addf %162, %161 : vector<16x256xf32>
    %cst_52 = arith.constant 5.000000e-01 : f32
    %164 = vector.broadcast %cst_52 : f32 to vector<16x256xf32>
    %165 = arith.mulf %164, %163 : vector<16x256xf32>
    %166 = arith.mulf %153, %165 : vector<16x256xf32>
    %167 = arith.truncf %166 : vector<16x256xf32> to vector<16x256xbf16>
    %c0_53 = arith.constant 0 : index
    %c0_54 = arith.constant 0 : index
    %c0_55 = arith.constant 0 : index
    %168 = vector.load %arg7[%c0_53, %c0_54, %c0_55] : memref<2x256x128xbf16, #tpu.memory_space<vmem>>, vector<1x256x128xbf16>
    %169 = vector.shape_cast %168 : vector<1x256x128xbf16> to vector<256x128xbf16>
    %cst_56 = arith.constant dense<0.000000e+00> : vector<16x128xf32>
    %170 = tpu.matmul %167, %169, %cst_56 {dimension_numbers = #tpu.dot_dimension_numbers<[1], [0], [0], [1], [0, 0, 1, 1], [], []>} : vector<16x256xbf16>, vector<256x128xbf16>, vector<16x128xf32> -> vector<16x128xf32>
    %c0_57 = arith.constant 0 : index
    %c1280 = arith.constant 1280 : index
    %171 = vector.load %arg8[%c0_57, %c1280] : memref<2x1408xf32, #tpu.memory_space<vmem>>, vector<1x128xf32>
    %172 = vector.broadcast %171 : vector<1x128xf32> to vector<16x128xf32>
    %173 = arith.addf %170, %172 : vector<16x128xf32>
    %174 = arith.addf %124, %173 : vector<16x128xf32>
    %c1_58 = arith.constant 1 : index
    %c512_59 = arith.constant 512 : index
    %175 = vector.load %arg8[%c1_58, %c512_59] : memref<2x1408xf32, #tpu.memory_space<vmem>>, vector<1x128xf32>
    %c1_60 = arith.constant 1 : index
    %c640_61 = arith.constant 640 : index
    %176 = vector.load %arg8[%c1_60, %c640_61] : memref<2x1408xf32, #tpu.memory_space<vmem>>, vector<1x128xf32>
    %cst_62 = arith.constant dense<0.000000e+00> : vector<16xf32>
    %177 = vector.multi_reduction <add>, %174, %cst_62 [1] : vector<16x128xf32> to vector<16xf32>
    %178 = vector.shape_cast %177 : vector<16xf32> to vector<16x1xf32>
    %cst_63 = arith.constant 1.280000e+02 : f32
    %179 = vector.broadcast %cst_63 : f32 to vector<16x1xf32>
    %180 = arith.divf %178, %179 : vector<16x1xf32>
    %181 = vector.broadcast %180 : vector<16x1xf32> to vector<16x128xf32>
    %182 = arith.subf %174, %181 : vector<16x128xf32>
    %183 = arith.mulf %182, %182 : vector<16x128xf32>
    %cst_64 = arith.constant dense<0.000000e+00> : vector<16xf32>
    %184 = vector.multi_reduction <add>, %183, %cst_64 [1] : vector<16x128xf32> to vector<16xf32>
    %185 = vector.shape_cast %184 : vector<16xf32> to vector<16x1xf32>
    %cst_65 = arith.constant 1.280000e+02 : f32
    %186 = vector.broadcast %cst_65 : f32 to vector<16x1xf32>
    %187 = arith.divf %185, %186 : vector<16x1xf32>
    %cst_66 = arith.constant 9.99999974E-6 : f32
    %188 = vector.broadcast %cst_66 : f32 to vector<16x1xf32>
    %189 = arith.addf %187, %188 : vector<16x1xf32>
    %190 = math.rsqrt %189 : vector<16x1xf32>
    %191 = vector.broadcast %190 : vector<16x1xf32> to vector<16x128xf32>
    %192 = arith.mulf %182, %191 : vector<16x128xf32>
    %193 = vector.broadcast %175 : vector<1x128xf32> to vector<16x128xf32>
    %194 = arith.mulf %192, %193 : vector<16x128xf32>
    %195 = vector.broadcast %176 : vector<1x128xf32> to vector<16x128xf32>
    %196 = arith.addf %194, %195 : vector<16x128xf32>
    %197 = arith.truncf %196 : vector<16x128xf32> to vector<16x128xbf16>
    %c1_67 = arith.constant 1 : index
    %c0_68 = arith.constant 0 : index
    %c0_69 = arith.constant 0 : index
    %198 = vector.load %arg4[%c1_67, %c0_68, %c0_69] : memref<2x128x384xbf16, #tpu.memory_space<vmem>>, vector<1x128x384xbf16>
    %199 = vector.shape_cast %198 : vector<1x128x384xbf16> to vector<128x384xbf16>
    %cst_70 = arith.constant dense<0.000000e+00> : vector<16x384xf32>
    %200 = tpu.matmul %197, %199, %cst_70 {dimension_numbers = #tpu.dot_dimension_numbers<[1], [0], [0], [1], [0, 0, 1, 1], [], []>} : vector<16x128xbf16>, vector<128x384xbf16>, vector<16x384xf32> -> vector<16x384xf32>
    %c1_71 = arith.constant 1 : index
    %c0_72 = arith.constant 0 : index
    %201 = vector.load %arg8[%c1_71, %c0_72] : memref<2x1408xf32, #tpu.memory_space<vmem>>, vector<1x384xf32>
    %202 = vector.broadcast %201 : vector<1x384xf32> to vector<16x384xf32>
    %203 = arith.addf %200, %202 : vector<16x384xf32>
    %204 = arith.truncf %203 : vector<16x384xf32> to vector<16x384xbf16>
    %205 = vector.extract_strided_slice %204 {offsets = [0, 0], sizes = [16, 128], strides = [1, 1]} : vector<16x384xbf16> to vector<16x128xbf16>
    %206 = vector.extract_strided_slice %204 {offsets = [0, 128], sizes = [16, 128], strides = [1, 1]} : vector<16x384xbf16> to vector<16x128xbf16>
    %207 = vector.extract_strided_slice %204 {offsets = [0, 256], sizes = [16, 128], strides = [1, 1]} : vector<16x384xbf16> to vector<16x128xbf16>
    %cst_73 = arith.constant dense<0.000000e+00> : vector<16x16xf32>
    %208 = tpu.matmul %205, %206, %cst_73 {dimension_numbers = #tpu.dot_dimension_numbers<[1], [1], [0], [0], [0, 0, 1, 0], [], []>} : vector<16x128xbf16>, vector<16x128xbf16>, vector<16x16xf32> -> vector<16x16xf32>
    %cst_74 = arith.constant -1.000000e+09 : f32
    %209 = vector.broadcast %cst_74 : f32 to vector<16x16xf32>
    %210 = arith.select %68, %208, %209 : vector<16x16xi1>, vector<16x16xf32>
    %cst_75 = arith.constant dense<0xFF800000> : vector<16xf32>
    %211 = vector.multi_reduction <maximumf>, %210, %cst_75 [1] : vector<16x16xf32> to vector<16xf32>
    %212 = vector.shape_cast %211 : vector<16xf32> to vector<16x1xf32>
    %213 = vector.broadcast %212 : vector<16x1xf32> to vector<16x16xf32>
    %214 = arith.subf %210, %213 : vector<16x16xf32>
    %215 = math.exp %214 : vector<16x16xf32>
    %cst_76 = arith.constant dense<0.000000e+00> : vector<16xf32>
    %216 = vector.multi_reduction <add>, %215, %cst_76 [1] : vector<16x16xf32> to vector<16xf32>
    %217 = vector.shape_cast %216 : vector<16xf32> to vector<16x1xf32>
    %218 = tpu.reciprocal %217 {approx = true} : vector<16x1xf32> -> vector<16x1xf32>
    %219 = vector.broadcast %218 : vector<16x1xf32> to vector<16x16xf32>
    %220 = arith.mulf %215, %219 : vector<16x16xf32>
    %221 = arith.truncf %220 : vector<16x16xf32> to vector<16x16xbf16>
    %cst_77 = arith.constant dense<0.000000e+00> : vector<16x128xf32>
    %222 = tpu.matmul %221, %207, %cst_77 {dimension_numbers = #tpu.dot_dimension_numbers<[1], [0], [0], [1], [0, 0, 1, 1], [], []>} : vector<16x16xbf16>, vector<16x128xbf16>, vector<16x128xf32> -> vector<16x128xf32>
    %223 = arith.truncf %222 : vector<16x128xf32> to vector<16x128xbf16>
    %c1_78 = arith.constant 1 : index
    %c0_79 = arith.constant 0 : index
    %c0_80 = arith.constant 0 : index
    %224 = vector.load %arg5[%c1_78, %c0_79, %c0_80] : memref<2x128x128xbf16, #tpu.memory_space<vmem>>, vector<1x128x128xbf16>
    %225 = vector.shape_cast %224 : vector<1x128x128xbf16> to vector<128x128xbf16>
    %cst_81 = arith.constant dense<0.000000e+00> : vector<16x128xf32>
    %226 = tpu.matmul %223, %225, %cst_81 {dimension_numbers = #tpu.dot_dimension_numbers<[1], [0], [0], [1], [0, 0, 1, 1], [], []>} : vector<16x128xbf16>, vector<128x128xbf16>, vector<16x128xf32> -> vector<16x128xf32>
    %c1_82 = arith.constant 1 : index
    %c384_83 = arith.constant 384 : index
    %227 = vector.load %arg8[%c1_82, %c384_83] : memref<2x1408xf32, #tpu.memory_space<vmem>>, vector<1x128xf32>
    %228 = vector.broadcast %227 : vector<1x128xf32> to vector<16x128xf32>
    %229 = arith.addf %226, %228 : vector<16x128xf32>
    %230 = arith.addf %174, %229 : vector<16x128xf32>
    %c1_84 = arith.constant 1 : index
    %c768_85 = arith.constant 768 : index
    %231 = vector.load %arg8[%c1_84, %c768_85] : memref<2x1408xf32, #tpu.memory_space<vmem>>, vector<1x128xf32>
    %c1_86 = arith.constant 1 : index
    %c896_87 = arith.constant 896 : index
    %232 = vector.load %arg8[%c1_86, %c896_87] : memref<2x1408xf32, #tpu.memory_space<vmem>>, vector<1x128xf32>
    %cst_88 = arith.constant dense<0.000000e+00> : vector<16xf32>
    %233 = vector.multi_reduction <add>, %230, %cst_88 [1] : vector<16x128xf32> to vector<16xf32>
    %234 = vector.shape_cast %233 : vector<16xf32> to vector<16x1xf32>
    %cst_89 = arith.constant 1.280000e+02 : f32
    %235 = vector.broadcast %cst_89 : f32 to vector<16x1xf32>
    %236 = arith.divf %234, %235 : vector<16x1xf32>
    %237 = vector.broadcast %236 : vector<16x1xf32> to vector<16x128xf32>
    %238 = arith.subf %230, %237 : vector<16x128xf32>
    %239 = arith.mulf %238, %238 : vector<16x128xf32>
    %cst_90 = arith.constant dense<0.000000e+00> : vector<16xf32>
    %240 = vector.multi_reduction <add>, %239, %cst_90 [1] : vector<16x128xf32> to vector<16xf32>
    %241 = vector.shape_cast %240 : vector<16xf32> to vector<16x1xf32>
    %cst_91 = arith.constant 1.280000e+02 : f32
    %242 = vector.broadcast %cst_91 : f32 to vector<16x1xf32>
    %243 = arith.divf %241, %242 : vector<16x1xf32>
    %cst_92 = arith.constant 9.99999974E-6 : f32
    %244 = vector.broadcast %cst_92 : f32 to vector<16x1xf32>
    %245 = arith.addf %243, %244 : vector<16x1xf32>
    %246 = math.rsqrt %245 : vector<16x1xf32>
    %247 = vector.broadcast %246 : vector<16x1xf32> to vector<16x128xf32>
    %248 = arith.mulf %238, %247 : vector<16x128xf32>
    %249 = vector.broadcast %231 : vector<1x128xf32> to vector<16x128xf32>
    %250 = arith.mulf %248, %249 : vector<16x128xf32>
    %251 = vector.broadcast %232 : vector<1x128xf32> to vector<16x128xf32>
    %252 = arith.addf %250, %251 : vector<16x128xf32>
    %253 = arith.truncf %252 : vector<16x128xf32> to vector<16x128xbf16>
    %c1_93 = arith.constant 1 : index
    %c0_94 = arith.constant 0 : index
    %c0_95 = arith.constant 0 : index
    %254 = vector.load %arg6[%c1_93, %c0_94, %c0_95] : memref<2x128x256xbf16, #tpu.memory_space<vmem>>, vector<1x128x256xbf16>
    %255 = vector.shape_cast %254 : vector<1x128x256xbf16> to vector<128x256xbf16>
    %cst_96 = arith.constant dense<0.000000e+00> : vector<16x256xf32>
    %256 = tpu.matmul %253, %255, %cst_96 {dimension_numbers = #tpu.dot_dimension_numbers<[1], [0], [0], [1], [0, 0, 1, 1], [], []>} : vector<16x128xbf16>, vector<128x256xbf16>, vector<16x256xf32> -> vector<16x256xf32>
    %c1_97 = arith.constant 1 : index
    %c1024_98 = arith.constant 1024 : index
    %257 = vector.load %arg8[%c1_97, %c1024_98] : memref<2x1408xf32, #tpu.memory_space<vmem>>, vector<1x256xf32>
    %258 = vector.broadcast %257 : vector<1x256xf32> to vector<16x256xf32>
    %259 = arith.addf %256, %258 : vector<16x256xf32>
    %260 = arith.mulf %259, %259 : vector<16x256xf32>
    %261 = arith.mulf %259, %260 : vector<16x256xf32>
    %cst_99 = arith.constant 4.471500e-02 : f32
    %262 = vector.broadcast %cst_99 : f32 to vector<16x256xf32>
    %263 = arith.mulf %262, %261 : vector<16x256xf32>
    %264 = arith.addf %259, %263 : vector<16x256xf32>
    %cst_100 = arith.constant 0.797884583 : f32
    %265 = vector.broadcast %cst_100 : f32 to vector<16x256xf32>
    %266 = arith.mulf %265, %264 : vector<16x256xf32>
    %267 = math.tanh %266 : vector<16x256xf32>
    %cst_101 = arith.constant 1.000000e+00 : f32
    %268 = vector.broadcast %cst_101 : f32 to vector<16x256xf32>
    %269 = arith.addf %268, %267 : vector<16x256xf32>
    %cst_102 = arith.constant 5.000000e-01 : f32
    %270 = vector.broadcast %cst_102 : f32 to vector<16x256xf32>
    %271 = arith.mulf %270, %269 : vector<16x256xf32>
    %272 = arith.mulf %259, %271 : vector<16x256xf32>
    %273 = arith.truncf %272 : vector<16x256xf32> to vector<16x256xbf16>
    %c1_103 = arith.constant 1 : index
    %c0_104 = arith.constant 0 : index
    %c0_105 = arith.constant 0 : index
    %274 = vector.load %arg7[%c1_103, %c0_104, %c0_105] : memref<2x256x128xbf16, #tpu.memory_space<vmem>>, vector<1x256x128xbf16>
    %275 = vector.shape_cast %274 : vector<1x256x128xbf16> to vector<256x128xbf16>
    %cst_106 = arith.constant dense<0.000000e+00> : vector<16x128xf32>
    %276 = tpu.matmul %273, %275, %cst_106 {dimension_numbers = #tpu.dot_dimension_numbers<[1], [0], [0], [1], [0, 0, 1, 1], [], []>} : vector<16x256xbf16>, vector<256x128xbf16>, vector<16x128xf32> -> vector<16x128xf32>
    %c1_107 = arith.constant 1 : index
    %c1280_108 = arith.constant 1280 : index
    %277 = vector.load %arg8[%c1_107, %c1280_108] : memref<2x1408xf32, #tpu.memory_space<vmem>>, vector<1x128xf32>
    %278 = vector.broadcast %277 : vector<1x128xf32> to vector<16x128xf32>
    %279 = arith.addf %276, %278 : vector<16x128xf32>
    %280 = arith.addf %230, %279 : vector<16x128xf32>
    %c0_109 = arith.constant 0 : index
    %c0_110 = arith.constant 0 : index
    %281 = vector.load %arg9[%c0_109, %c0_110] : memref<16x128xf32, #tpu.memory_space<vmem>>, vector<16x128xf32>
    tpu.vector_store %arg9[%c0_109, %c0_110], %280 {strides = array<i32>} : memref<16x128xf32, #tpu.memory_space<vmem>>, vector<16x128xf32>,
    return
  }
  func.func @transform_0(%arg0: i32, %arg1: memref<2xi32, #tpu.memory_space<smem>>) -> (i32, i32) {
    %c0_i32 = arith.constant 0 : i32
    %c0_i32_0 = arith.constant 0 : i32
    return %arg0, %c0_i32 : i32, i32
  }
  func.func @transform_1(%arg0: i32, %arg1: memref<2xi32, #tpu.memory_space<smem>>) -> (i32, i32) {
    %c0_i32 = arith.constant 0 : i32
    %c0_i32_0 = arith.constant 0 : i32
    %c0_i32_1 = arith.constant 0 : i32
    return %c0_i32, %c0_i32_0 : i32, i32
  }
  func.func @transform_2(%arg0: i32, %arg1: memref<2xi32, #tpu.memory_space<smem>>) -> (i32, i32, i32) {
    %c0_i32 = arith.constant 0 : i32
    %c0_i32_0 = arith.constant 0 : i32
    %c0_i32_1 = arith.constant 0 : i32
    %c0_i32_2 = arith.constant 0 : i32
    return %c0_i32, %c0_i32_0, %c0_i32_1 : i32, i32, i32
  }
  func.func @transform_3(%arg0: i32, %arg1: memref<2xi32, #tpu.memory_space<smem>>) -> (i32, i32, i32) {
    %c0_i32 = arith.constant 0 : i32
    %c0_i32_0 = arith.constant 0 : i32
    %c0_i32_1 = arith.constant 0 : i32
    %c0_i32_2 = arith.constant 0 : i32
    return %c0_i32, %c0_i32_0, %c0_i32_1 : i32, i32, i32
  }
  func.func @transform_4(%arg0: i32, %arg1: memref<2xi32, #tpu.memory_space<smem>>) -> (i32, i32, i32) {
    %c0_i32 = arith.constant 0 : i32
    %c0_i32_0 = arith.constant 0 : i32
    %c0_i32_1 = arith.constant 0 : i32
    %c0_i32_2 = arith.constant 0 : i32
    return %c0_i32, %c0_i32_0, %c0_i32_1 : i32, i32, i32
  }
  func.func @transform_5(%arg0: i32, %arg1: memref<2xi32, #tpu.memory_space<smem>>) -> (i32, i32, i32) {
    %c0_i32 = arith.constant 0 : i32
    %c0_i32_0 = arith.constant 0 : i32
    %c0_i32_1 = arith.constant 0 : i32
    %c0_i32_2 = arith.constant 0 : i32
    return %c0_i32, %c0_i32_0, %c0_i32_1 : i32, i32, i32
  }
  func.func @transform_6(%arg0: i32, %arg1: memref<2xi32, #tpu.memory_space<smem>>) -> (i32, i32) {
    %c0_i32 = arith.constant 0 : i32
    %c0_i32_0 = arith.constant 0 : i32
    %c0_i32_1 = arith.constant 0 : i32
    return %c0_i32, %c0_i32_0 : i32, i32
  }
  func.func @transform_7(%arg0: i32, %arg1: memref<2xi32, #tpu.memory_space<smem>>) -> (i32, i32) {
    %c0_i32 = arith.constant 0 : i32
    %c0_i32_0 = arith.constant 0 : i32
    return %c0_i32, %arg0 : i32, i32
  }
}

</mosaic_0001>

<llo_original>
// kernel: squeeze.5
$region0: #{squeeze.5}
  %s0 = inlined_call_operand.vmem [shape: f32[2,128,1], index: 0, kind: input, shape index: {}]
  %s1 = inlined_call_operand.vmem [shape: f32[32,8], index: 1, kind: output, shape index: {}]
  $region1: #{squeeze.5} parent=0
    #allocation0 [shape = 'u8[4096]{0}', space=vmem, size = 0x1000, scoped, tag = 'scoped mem for input reshape']
    %s3 = ssub.s32 4, 1
    %v4 = vld [vmem:[%s0] sm:%s3]
    %5 = vst [vmem:[#allocation0] sm:%s3] %v4
    %v6 = vld [vmem:[#allocation0] sm:$0x3]
    %vm7 = vcmask 64512
    %8 = vst.msk [vmem:[%s1] ss:$16 sm:$0x3] %vm7, %v6
    %v9 = vld [vmem:[#allocation0] sm:$0x3]
    %10 = vrot.lane.b32.xlu0 %v9, 120
    %v11 = vpop.permute.xlu0 %10
    %vm12 = vcmask 64512
    %s13 = scalar_lea.vmem %s1, 1
    %14 = vst.msk [vmem:[%s13] ss:$16 sm:$0x3] %vm12, %v11
    %v15 = vld [vmem:[#allocation0] sm:$0x3]
    %16 = vrot.lane.b32.xlu0 %v15, 112
    %v17 = vpop.permute.xlu0 %16
    %vm18 = vcmask 64512
    %s19 = scalar_lea.vmem %s1, 2
    %20 = vst.msk [vmem:[%s19] ss:$16 sm:$0x3] %vm18, %v17
    %v21 = vld [vmem:[#allocation0] sm:$0x3]
    %22 = vrot.lane.b32.xlu0 %v21, 104
    %v23 = vpop.permute.xlu0 %22
    %vm24 = vcmask 64512
    %s25 = scalar_lea.vmem %s1, 3
    %26 = vst.msk [vmem:[%s25] ss:$16 sm:$0x3] %vm24, %v23
    %v27 = vld [vmem:[#allocation0] sm:$0x3]
    %28 = vrot.lane.b32.xlu0 %v27, 96
    %v29 = vpop.permute.xlu0 %28
    %vm30 = vcmask 64512
    %s31 = scalar_lea.vmem %s1, 4
    %32 = vst.msk [vmem:[%s31] ss:$16 sm:$0x3] %vm30, %v29
    %v33 = vld [vmem:[#allocation0] sm:$0x3]
    %34 = vrot.lane.b32.xlu0 %v33, 88
    %v35 = vpop.permute.xlu0 %34
    %vm36 = vcmask 64512
    %s37 = scalar_lea.vmem %s1, 5
    %38 = vst.msk [vmem:[%s37] ss:$16 sm:$0x3] %vm36, %v35
    %v39 = vld [vmem:[#allocation0] sm:$0x3]
    %40 = vrot.lane.b32.xlu0 %v39, 80
    %v41 = vpop.permute.xlu0 %40
    %vm42 = vcmask 64512
    %s43 = scalar_lea.vmem %s1, 6
    %44 = vst.msk [vmem:[%s43] ss:$16 sm:$0x3] %vm42, %v41
    %v45 = vld [vmem:[#allocation0] sm:$0x3]
    %46 = vrot.lane.b32.xlu0 %v45, 72
    %v47 = vpop.permute.xlu0 %46
    %vm48 = vcmask 64512
    %s49 = scalar_lea.vmem %s1, 7
    %50 = vst.msk [vmem:[%s49] ss:$16 sm:$0x3] %vm48, %v47
    %v51 = vld [vmem:[#allocation0] sm:$0x3]
    %52 = vrot.lane.b32.xlu0 %v51, 64
    %v53 = vpop.permute.xlu0 %52
    %vm54 = vcmask 64512
    %s55 = scalar_lea.vmem %s1, 8
    %56 = vst.msk [vmem:[%s55] ss:$16 sm:$0x3] %vm54, %v53
    %v57 = vld [vmem:[#allocation0] sm:$0x3]
    %58 = vrot.lane.b32.xlu0 %v57, 56
    %v59 = vpop.permute.xlu0 %58
    %vm60 = vcmask 64512
    %s61 = scalar_lea.vmem %s1, 9
    %62 = vst.msk [vmem:[%s61] ss:$16 sm:$0x3] %vm60, %v59
    %v63 = vld [vmem:[#allocation0] sm:$0x3]
    %64 = vrot.lane.b32.xlu0 %v63, 48
    %v65 = vpop.permute.xlu0 %64
    %vm66 = vcmask 64512
    %s67 = scalar_lea.vmem %s1, 10
    %68 = vst.msk [vmem:[%s67] ss:$16 sm:$0x3] %vm66, %v65
    %v69 = vld [vmem:[#allocation0] sm:$0x3]
    %70 = vrot.lane.b32.xlu0 %v69, 40
    %v71 = vpop.permute.xlu0 %70
    %vm72 = vcmask 64512
    %s73 = scalar_lea.vmem %s1, 11
    %74 = vst.msk [vmem:[%s73] ss:$16 sm:$0x3] %vm72, %v71
    %v75 = vld [vmem:[#allocation0] sm:$0x3]
    %76 = vrot.lane.b32.xlu0 %v75, 32
    %v77 = vpop.permute.xlu0 %76
    %vm78 = vcmask 64512
    %s79 = scalar_lea.vmem %s1, 12
    %80 = vst.msk [vmem:[%s79] ss:$16 sm:$0x3] %vm78, %v77
    %v81 = vld [vmem:[#allocation0] sm:$0x3]
    %82 = vrot.lane.b32.xlu0 %v81, 24
    %v83 = vpop.permute.xlu0 %82
    %vm84 = vcmask 64512
    %s85 = scalar_lea.vmem %s1, 13
    %86 = vst.msk [vmem:[%s85] ss:$16 sm:$0x3] %vm84, %v83
    %v87 = vld [vmem:[#allocation0] sm:$0x3]
    %88 = vrot.lane.b32.xlu0 %v87, 16
    %v89 = vpop.permute.xlu0 %88
    %vm90 = vcmask 64512
    %s91 = scalar_lea.vmem %s1, 14
    %92 = vst.msk [vmem:[%s91] ss:$16 sm:$0x3] %vm90, %v89
    %v93 = vld [vmem:[#allocation0] sm:$0x3]
    %94 = vrot.lane.b32.xlu0 %v93, 8
    %v95 = vpop.permute.xlu0 %94
    %vm96 = vcmask 64512
    %s97 = scalar_lea.vmem %s1, 15
    %98 = vst.msk [vmem:[%s97] ss:$16 sm:$0x3] %vm96, %v95

// kernel: xeus_forward.1
$region0: #{xeus_forward.1}
  #allocation0 [shape = 'u32[]', space=smem, size = 0x4, offset = 0x4, fixed_abs, tag = 'smem constant byte address 0x4 - core index']
  #allocation1 [shape = 'u32[72,128]{1,0:T(1,128)}', space=vmem, size = 0x9000, scoped, tag = 'internal scratch']
  #allocation2 [shape = 's32[1]{0}', space=sflag, size = 0x4, scoped, tag = 'scoped memory for xeus_forward.1']
  #allocation3 [shape = 'u8[512]{0}', space=smem, size = 0x200, scoped, tag = 'prefetched SMEM operand 0']
  %s0 = inlined_call_operand.vmem [shape: s32[2], index: 0, kind: input, shape index: {}]
  %s1 = inlined_call_operand.vmem [shape: f32[32,8], index: 1, kind: input, shape index: {}]
  %s2 = inlined_call_operand.vmem [shape: f32[9,128], index: 2, kind: input, shape index: {}]
  %s3 = inlined_call_operand.hbm [shape: bf16[2,128,384], index: 3, kind: input, shape index: {}]
  %s4 = inlined_call_operand.hbm [shape: bf16[2,128,128], index: 4, kind: input, shape index: {}]
  %s5 = inlined_call_operand.hbm [shape: bf16[2,128,256], index: 5, kind: input, shape index: {}]
  %s6 = inlined_call_operand.hbm [shape: bf16[2,256,128], index: 6, kind: input, shape index: {}]
  %s7 = inlined_call_operand.vmem [shape: f32[2,1408], index: 7, kind: input, shape index: {}]
  %s8 = inlined_call_operand.vmem [shape: f32[16,256], index: 8, kind: output, shape index: {}]
  %s9 = sld [smem:[#allocation0]]
  $region111: #{xeus_forward.1} parent=0
    _
  %s11 = ssub.s32 1, %s9
  %s12 = scalar_select 0, %s11, %s9
  %s14 = sshll.u32 %s0, 4
  %s15 = int_to_ptr.vmem [resolvable:$true] %s14
  %17 = dma.vmem_to_smem %s15, 16, [#allocation3], [#allocation2]
  %19 = dma.done [#allocation2], 16
  %20 = sfence
  $region1: #{xeus_forward.1} parent=0
    #allocation4 [shape = 'u8[196608]{0}', space=vmem, size = 0x30000, scoped, tag = 'input window, operand 3, single buffered']
    #allocation5 [shape = 's32[2]{0}', space=sflag, size = 0x8, scoped, tag = 'scoped memory for xeus_forward.1']
    #allocation6 [shape = 'u8[65536]{0}', space=vmem, size = 0x10000, scoped, tag = 'input window, operand 4, single buffered']
    #allocation7 [shape = 's32[1]{0}', space=sflag, size = 0x4, scoped, tag = 'scoped memory for xeus_forward.1']
    #allocation8 [shape = 'u8[131072]{0}', space=vmem, size = 0x20000, scoped, tag = 'input window, operand 5, single buffered']
    #allocation9 [shape = 'u8[131072]{0}', space=vmem, size = 0x20000, scoped, tag = 'input window, operand 6, single buffered']
    #allocation10 [shape = 's32[1]{0}', space=sflag, size = 0x4, scoped, tag = 'scoped memory for xeus_forward.1']
    #allocation11 [shape = 'u8[16384]{0}', space=vmem, size = 0x4000, scoped, tag = 'output window, operand 0']
    %21 = vsyncpa [#allocation5], 0
    %22 = vsyncpa [#allocation7], 0
    %23 = vsyncpa [#allocation10], 0
    loop: start=0, step=1, limit=4
    $region2: #{xeus_forward.1} parent=1 // loop_pre_header
      _
    $region3: #{xeus_forward.1} parent=1 // loop_header
      %s25 = sphi 0, %s29
      %p26 = scmp.ge.s32.totalorder %s25, 4
      %s35 = sphi 0, %s37
      %s38 = sphi 0, %s35
      %s39 = sphi 0, %s38
      %s55 = sphi 0, %s39
      %s59 = sphi 0, %s59
      %s61 = sphi 0, %s59
      %s62 = sphi 0, %s61
      %s76 = sphi 0, %s62
      %s80 = sphi 0, %s80
      %s82 = sphi 0, %s80
      %s83 = sphi 0, %s82
      %s97 = sphi 0, %s83
      %s101 = sphi 0, %s101
      %s103 = sphi 0, %s101
      %s104 = sphi 0, %s103
      %s118 = sphi 0, %s104
      %s122 = sphi 0, %s122
      %s124 = sphi 0, %s122
      %s125 = sphi 0, %s124
      %s139 = sphi 0, %s125
      %s143 = sphi 0, %s143
      %s145 = sphi 0, %s143
      %s146 = sphi 0, %s145
      %s160 = sphi 0, %s146
      %s164 = sphi 0, %s164
      %s166 = sphi 0, %s164
      %s167 = sphi 0, %s166
      %s181 = sphi 0, %s167
      %s187 = sphi 0, %s189
      %s190 = sphi 0, %s187
      %s191 = sphi 0, %s190
      %s207 = sphi 0, %s191
    $region4: #{xeus_forward.1} parent=1 // loop_header_branch
      %28 = sbr.rel (%p26) target = $region8
    $region5: #{xeus_forward.1} parent=1 // loop_body
      %s30 = ssub.s32 %s25, 1
      %s31 = ssub.s32 %s25, 2
      %s32 = sadd.s32 %s25, 1
      %s33 = ssub.s32 %s25, %s32
      %p34 = scmp.eq.s32.totalorder %s33, 0
      %s36 = sadd.s32 %s35, 1
      %s37 = scalar_select %p34, %s35, %s36
      %p40 = pneg %p34
      %p41 = scmp.eq.s32.totalorder %s25, 1
      %p42 = por %p40, %p41
      %p43 = scmp.ne.s32.totalorder %s35, %s38
      %p44 = scmp.eq.s32.totalorder %s25, 0
      %p45 = por %p43, %p44
      %p46 = scmp.ne.s32.totalorder %s35, %s38
      %p47 = scmp.eq.s32.totalorder %s30, 1
      %p48 = por %p46, %p47
      %p49 = scmp.ne.s32.totalorder %s38, %s39
      %p50 = scmp.eq.s32.totalorder %s30, 0
      %p51 = por %p49, %p50
      %p52 = scmp.ne.s32.totalorder %s38, %s39
      %p53 = scmp.eq.s32.totalorder %s31, 1
      %p54 = por %p52, %p53
      %p56 = scmp.ne.s32.totalorder %s39, %s55
      %p57 = scmp.eq.s32.totalorder %s31, 0
      %p58 = por %p56, %p57
      %s60 = sadd.s32 %s59, 1
      %p63 = scmp.eq.s32.totalorder %s25, 1
      %p64 = scmp.ne.s32.totalorder %s59, %s61
      %p65 = scmp.eq.s32.totalorder %s25, 0
      %p66 = por %p64, %p65
      %p67 = scmp.ne.s32.totalorder %s59, %s61
      %p68 = scmp.eq.s32.totalorder %s30, 1
      %p69 = por %p67, %p68
      %p70 = scmp.ne.s32.totalorder %s61, %s62
      %p71 = scmp.eq.s32.totalorder %s30, 0
      %p72 = por %p70, %p71
      %p73 = scmp.ne.s32.totalorder %s61, %s62
      %p74 = scmp.eq.s32.totalorder %s31, 1
      %p75 = por %p73, %p74
      %p77 = scmp.ne.s32.totalorder %s62, %s76
      %p78 = scmp.eq.s32.totalorder %s31, 0
      %p79 = por %p77, %p78
      %s81 = sadd.s32 %s80, 1
      %p84 = scmp.eq.s32.totalorder %s25, 1
      %p85 = scmp.ne.s32.totalorder %s80, %s82
      %p86 = scmp.eq.s32.totalorder %s25, 0
      %p87 = por %p85, %p86
      %p88 = scmp.ne.s32.totalorder %s80, %s82
      %p89 = scmp.eq.s32.totalorder %s30, 1
      %p90 = por %p88, %p89
      %p91 = scmp.ne.s32.totalorder %s82, %s83
      %p92 = scmp.eq.s32.totalorder %s30, 0
      %p93 = por %p91, %p92
      %p94 = scmp.ne.s32.totalorder %s82, %s83
      %p95 = scmp.eq.s32.totalorder %s31, 1
      %p96 = por %p94, %p95
      %p98 = scmp.ne.s32.totalorder %s83, %s97
      %p99 = scmp.eq.s32.totalorder %s31, 0
      %p100 = por %p98, %p99
      %s102 = sadd.s32 %s101, 1
      %p105 = scmp.eq.s32.totalorder %s25, 1
      %p106 = scmp.ne.s32.totalorder %s101, %s103
      %p107 = scmp.eq.s32.totalorder %s25, 0
      %p108 = por %p106, %p107
      %p109 = scmp.ne.s32.totalorder %s101, %s103
      %p110 = scmp.eq.s32.totalorder %s30, 1
      %p111 = por %p109, %p110
      %p112 = scmp.ne.s32.totalorder %s103, %s104
      %p113 = scmp.eq.s32.totalorder %s30, 0
      %p114 = por %p112, %p113
      %p115 = scmp.ne.s32.totalorder %s103, %s104
      %p116 = scmp.eq.s32.totalorder %s31, 1
      %p117 = por %p115, %p116
      %p119 = scmp.ne.s32.totalorder %s104, %s118
      %p120 = scmp.eq.s32.totalorder %s31, 0
      %p121 = por %p119, %p120
      %s123 = sadd.s32 %s122, 1
      %p126 = scmp.eq.s32.totalorder %s25, 1
      %p127 = scmp.ne.s32.totalorder %s122, %s124
      %p128 = scmp.eq.s32.totalorder %s25, 0
      %p129 = por %p127, %p128
      %p130 = scmp.ne.s32.totalorder %s122, %s124
      %p131 = scmp.eq.s32.totalorder %s30, 1
      %p132 = por %p130, %p131
      %p133 = scmp.ne.s32.totalorder %s124, %s125
      %p134 = scmp.eq.s32.totalorder %s30, 0
      %p135 = por %p133, %p134
      %p136 = scmp.ne.s32.totalorder %s124, %s125
      %p137 = scmp.eq.s32.totalorder %s31, 1
      %p138 = por %p136, %p137
      %p140 = scmp.ne.s32.totalorder %s125, %s139
      %p141 = scmp.eq.s32.totalorder %s31, 0
      %p142 = por %p140, %p141
      %s144 = sadd.s32 %s143, 1
      %p147 = scmp.eq.s32.totalorder %s25, 1
      %p148 = scmp.ne.s32.totalorder %s143, %s145
      %p149 = scmp.eq.s32.totalorder %s25, 0
      %p150 = por %p148, %p149
      %p151 = scmp.ne.s32.totalorder %s143, %s145
      %p152 = scmp.eq.s32.totalorder %s30, 1
      %p153 = por %p151, %p152
      %p154 = scmp.ne.s32.totalorder %s145, %s146
      %p155 = scmp.eq.s32.totalorder %s30, 0
      %p156 = por %p154, %p155
      %p157 = scmp.ne.s32.totalorder %s145, %s146
      %p158 = scmp.eq.s32.totalorder %s31, 1
      %p159 = por %p157, %p158
      %p161 = scmp.ne.s32.totalorder %s146, %s160
      %p162 = scmp.eq.s32.totalorder %s31, 0
      %p163 = por %p161, %p162
      %s165 = sadd.s32 %s164, 1
      %p168 = scmp.eq.s32.totalorder %s25, 1
      %p169 = scmp.ne.s32.totalorder %s164, %s166
      %p170 = scmp.eq.s32.totalorder %s25, 0
      %p171 = por %p169, %p170
      %p172 = scmp.ne.s32.totalorder %s164, %s166
      %p173 = scmp.eq.s32.totalorder %s30, 1
      %p174 = por %p172, %p173
      %p175 = scmp.ne.s32.totalorder %s166, %s167
      %p176 = scmp.eq.s32.totalorder %s30, 0
      %p177 = por %p175, %p176
      %p178 = scmp.ne.s32.totalorder %s166, %s167
      %p179 = scmp.eq.s32.totalorder %s31, 1
      %p180 = por %p178, %p179
      %p182 = scmp.ne.s32.totalorder %s167, %s181
      %p183 = scmp.eq.s32.totalorder %s31, 0
      %p184 = por %p182, %p183
      %s185 = ssub.s32 %s25, %s32
      %p186 = scmp.eq.s32.totalorder %s185, 0
      %s188 = sadd.s32 %s187, 1
      %s189 = scalar_select %p186, %s187, %s188
      %p192 = pneg %p186
      %p193 = scmp.eq.s32.totalorder %s25, 1
      %p194 = por %p192, %p193
      %p195 = scmp.ne.s32.totalorder %s187, %s190
      %p196 = scmp.eq.s32.totalorder %s25, 0
      %p197 = por %p195, %p196
      %p198 = scmp.ne.s32.totalorder %s187, %s190
      %p199 = scmp.eq.s32.totalorder %s30, 1
      %p200 = por %p198, %p199
      %p201 = scmp.ne.s32.totalorder %s190, %s191
      %p202 = scmp.eq.s32.totalorder %s30, 0
      %p203 = por %p201, %p202
      %p204 = scmp.ne.s32.totalorder %s190, %s191
      %p205 = scmp.eq.s32.totalorder %s31, 1
      %p206 = por %p204, %p205
      %p208 = scmp.ne.s32.totalorder %s191, %s207
      %p209 = scmp.eq.s32.totalorder %s31, 0
      %p210 = por %p208, %p209
      %p211 = scmp.le.s32.totalorder 1, %s25
      %p212 = scmp.lt.s32.totalorder %s25, 3
      %p213 = pnand %p211, %p212
      %p214 = pneg %p213
      // Predicated region
      $region9: #{xeus_forward.1} parent=5 // pred_check
        _
      $region10: #{xeus_forward.1} parent=5 // pred_check_branch
        %216 = sbr.rel (%p213) target = $region12
      $region11: #{xeus_forward.1} parent=5 // pred_region
        %s217 = ssub.s32 %s25, 1
        // Predicated region
        $region13: #{xeus_forward.1} parent=11 // pred_check
          %p218 = pneg %p72
        $region14: #{xeus_forward.1} parent=11 // pred_check_branch
          %220 = sbr.rel (%p218) target = $region16
        $region15: #{xeus_forward.1} parent=11 // pred_region
          _
        $region16: #{xeus_forward.1} parent=11 // pred_fallthru
          _
        // Predicated region
        $region17: #{xeus_forward.1} parent=11 // pred_check
          %p221 = pneg %p93
        $region18: #{xeus_forward.1} parent=11 // pred_check_branch
          %223 = sbr.rel (%p221) target = $region20
        $region19: #{xeus_forward.1} parent=11 // pred_region
          %225 = vsyncadd [#allocation5], 0
          %s226 = sshll.u32 %s3, 4
          %s227 = int_to_ptr.hbm [resolvable:$true] %s226
          %s228 = sshll.u32 [#allocation4], 4
          %s229 = int_to_ptr.vmem [resolvable:$true] %s228
          %234 = dma.hbm_to_vmem [thread:$0]  %s227, 6144, %s229, [#allocation5], 192, 192, 12
        $region20: #{xeus_forward.1} parent=11 // pred_fallthru
          _
        // Predicated region
        $region21: #{xeus_forward.1} parent=11 // pred_check
          %p235 = pneg %p114
        $region22: #{xeus_forward.1} parent=11 // pred_check_branch
          %237 = sbr.rel (%p235) target = $region24
        $region23: #{xeus_forward.1} parent=11 // pred_region
          %239 = vsyncadd [#allocation7], 0
          %s240 = sshll.u32 %s4, 4
          %s241 = int_to_ptr.hbm [resolvable:$true] %s240
          %s242 = sshll.u32 [#allocation6], 4
          %s243 = int_to_ptr.vmem [resolvable:$true] %s242
          %248 = dma.hbm_to_vmem [thread:$0]  %s241, 2048, %s243, [#allocation7], 64, 64, 4
        $region24: #{xeus_forward.1} parent=11 // pred_fallthru
          _
        // Predicated region
        $region25: #{xeus_forward.1} parent=11 // pred_check
          %p249 = pneg %p135
        $region26: #{xeus_forward.1} parent=11 // pred_check_branch
          %251 = sbr.rel (%p249) target = $region28
        $region27: #{xeus_forward.1} parent=11 // pred_region
          %253 = vsyncadd [#allocation7], 0
          %s254 = sshll.u32 %s5, 4
          %s255 = int_to_ptr.hbm [resolvable:$true] %s254
          %s256 = sshll.u32 [#allocation8], 4
          %s257 = int_to_ptr.vmem [resolvable:$true] %s256
          %262 = dma.hbm_to_vmem [thread:$0]  %s255, 4096, %s257, [#allocation7], 128, 128, 8
        $region28: #{xeus_forward.1} parent=11 // pred_fallthru
          _
        // Predicated region
        $region29: #{xeus_forward.1} parent=11 // pred_check
          %p263 = pneg %p156
        $region30: #{xeus_forward.1} parent=11 // pred_check_branch
          %265 = sbr.rel (%p263) target = $region32
        $region31: #{xeus_forward.1} parent=11 // pred_region
          %267 = vsyncadd [#allocation10], 0
          %s268 = sshll.u32 %s6, 4
          %s269 = int_to_ptr.hbm [resolvable:$true] %s268
          %s270 = sshll.u32 [#allocation9], 4
          %s271 = int_to_ptr.vmem [resolvable:$true] %s270
          %276 = dma.hbm_to_vmem [thread:$0]  %s269, 4096, %s271, [#allocation10], 64, 64, 4
        $region32: #{xeus_forward.1} parent=11 // pred_fallthru
          _
        // Predicated region
        $region33: #{xeus_forward.1} parent=11 // pred_check
          %p277 = pneg %p177
        $region34: #{xeus_forward.1} parent=11 // pred_check_branch
          %279 = sbr.rel (%p277) target = $region36
        $region35: #{xeus_forward.1} parent=11 // pred_region
          _
        $region36: #{xeus_forward.1} parent=11 // pred_fallthru
          _
      $region12: #{xeus_forward.1} parent=5 // pred_fallthru
        _
      %p280 = scmp.lt.s32.totalorder %s25, 2
      // Predicated region
      $region37: #{xeus_forward.1} parent=5 // pred_check
        %p281 = pneg %p280
      $region38: #{xeus_forward.1} parent=5 // pred_check_branch
        %283 = sbr.rel (%p281) target = $region40
      $region39: #{xeus_forward.1} parent=5 // pred_region
        // Predicated region
        $region41: #{xeus_forward.1} parent=39 // pred_check
          %p284 = pneg %p45
        $region42: #{xeus_forward.1} parent=39 // pred_check_branch
          %286 = sbr.rel (%p284) target = $region44
        $region43: #{xeus_forward.1} parent=39 // pred_region
          %s287 = smul.u32 2, %s25
          %p288 = scmp.lt.s32.totalorder %s287, 3
          %s289 = scalar_select %p288, %s287, 3
          %s290 = smul.addr %s289, 8
          %s291 = scalar_lea.vmem %s1, %s290
          %s292 = smul.u32 2, %s25
        $region44: #{xeus_forward.1} parent=39 // pred_fallthru
          _
      $region40: #{xeus_forward.1} parent=5 // pred_fallthru
        _
      %p293 = scmp.le.s32.totalorder 1, %s25
      %p294 = scmp.lt.s32.totalorder %s25, 3
      %p295 = pnand %p293, %p294
      %p296 = pneg %p295
      // Predicated region
      $region45: #{xeus_forward.1} parent=5 // pred_check
        _
      $region46: #{xeus_forward.1} parent=5 // pred_check_branch
        %298 = sbr.rel (%p295) target = $region48
      $region47: #{xeus_forward.1} parent=5 // pred_region
        %s299 = ssub.s32 %s25, 1
        // Predicated region
        $region49: #{xeus_forward.1} parent=47 // pred_check
          %p300 = pneg %p93
        $region50: #{xeus_forward.1} parent=47 // pred_check_branch
          %302 = sbr.rel (%p300) target = $region52
        $region51: #{xeus_forward.1} parent=47 // pred_region
          %304 = dma.done [#allocation5], 6144
        $region52: #{xeus_forward.1} parent=47 // pred_fallthru
          _
        // Predicated region
        $region53: #{xeus_forward.1} parent=47 // pred_check
          %p305 = pneg %p114
        $region54: #{xeus_forward.1} parent=47 // pred_check_branch
          %307 = sbr.rel (%p305) target = $region56
        $region55: #{xeus_forward.1} parent=47 // pred_region
          %309 = dma.done [#allocation7], 2048
        $region56: #{xeus_forward.1} parent=47 // pred_fallthru
          _
        // Predicated region
        $region57: #{xeus_forward.1} parent=47 // pred_check
          %p310 = pneg %p135
        $region58: #{xeus_forward.1} parent=47 // pred_check_branch
          %312 = sbr.rel (%p310) target = $region60
        $region59: #{xeus_forward.1} parent=47 // pred_region
          %314 = dma.done [#allocation7], 4096
        $region60: #{xeus_forward.1} parent=47 // pred_fallthru
          _
        // Predicated region
        $region61: #{xeus_forward.1} parent=47 // pred_check
          %p315 = pneg %p156
        $region62: #{xeus_forward.1} parent=47 // pred_check_branch
          %317 = sbr.rel (%p315) target = $region64
        $region63: #{xeus_forward.1} parent=47 // pred_region
          %319 = dma.done [#allocation10], 4096
        $region64: #{xeus_forward.1} parent=47 // pred_fallthru
          _
        %s320 = smul.u32 2, %s30
        %p321 = scmp.lt.s32.totalorder %s320, 3
        %s322 = scalar_select %p321, %s320, 3
        %s323 = smul.addr %s322, 8
        %s324 = scalar_lea.vmem %s1, %s323
        %p325 = pneg %p51
        %p326 = pneg %p48
        %p327 = pneg %p72
        %p328 = pneg %p69
        %p329 = pneg %p93
        %p330 = pneg %p90
        %p331 = pneg %p114
        %p332 = pneg %p111
        %p333 = pneg %p135
        %p334 = pneg %p132
        %p335 = pneg %p156
        %p336 = pneg %p153
        %p337 = pneg %p177
        %p338 = pneg %p174
        %p339 = pneg %p203
        %p340 = pneg %p200
        %s341 = sand.u32 %s190, 1
        %s342 = sand.u32 %s190, 1
        %s343 = smul.addr %s342, 16
        %s344 = scalar_lea.vmem [#allocation11], %s343
        %s345 = smul.u32 2, %s30
        %p346 = scmp.lt.s32.totalorder %s345, 3
        %s347 = scalar_select %p346, %s345, 3
        %s348 = smul.addr %s347, 8
        %s349 = scalar_lea.vmem %s1, %s348
        %s350 = smul.u32 2, %s30
        %s352 = sld [smem:[#allocation3 + %s30]]
        %v353 = vld [vmem:[%s349] sm:$0xff]
        %v354 = vld [vmem:[%s349 + $0x8] sm:$0xff]
        %v355 = vld [vmem:[%s2 + $0x8] sm:$0x1]
        %v356 = vld [vmem:[%s2] sm:$0x1]
        %358 = vset.pattern.permute.xlu0 0
        %359 = vperm.xlu0 %358, %v353
        %v360 = vpop.permute.xlu0 %359
        %363 = vset.pattern.permute.xlu0 0
        %364 = vperm.xlu0 %363, %v354
        %v365 = vpop.permute.xlu0 %364
        %v367 = vperm.slane %v356, 0
        %v368 = vmul.f32 %v360, %v367
        %v369 = vmul.f32 %v365, %v367
        %v370 = vperm.slane %v355, 0
        %v371 = vadd.f32 %v370, %v368
        %v372 = vadd.f32 %v370, %v369
        %v373 = vld [vmem:[%s2 + $0x1] sm:$0x1]
        %374 = vset.pattern.permute.xlu0 1
        %375 = vperm.xlu0 %374, %v353
        %v376 = vpop.permute.xlu0 %375
        %378 = vset.pattern.permute.xlu0 1
        %379 = vperm.xlu0 %378, %v354
        %v380 = vpop.permute.xlu0 %379
        %v382 = vperm.slane %v373, 0
        %v383 = vmul.f32 %v376, %v382
        %v384 = vmul.f32 %v380, %v382
        %v385 = vadd.f32 %v371, %v383
        %v386 = vadd.f32 %v372, %v384
        %v387 = vld [vmem:[%s2 + $0x2] sm:$0x1]
        %388 = vset.pattern.permute.xlu0 2
        %389 = vperm.xlu0 %388, %v353
        %v390 = vpop.permute.xlu0 %389
        %392 = vset.pattern.permute.xlu0 2
        %393 = vperm.xlu0 %392, %v354
        %v394 = vpop.permute.xlu0 %393
        %v396 = vperm.slane %v387, 0
        %v397 = vmul.f32 %v390, %v396
        %v398 = vmul.f32 %v394, %v396
        %v399 = vadd.f32 %v385, %v397
        %v400 = vadd.f32 %v386, %v398
        %v401 = vld [vmem:[%s2 + $0x3] sm:$0x1]
        %402 = vset.pattern.permute.xlu0 3
        %403 = vperm.xlu0 %402, %v353
        %v404 = vpop.permute.xlu0 %403
        %406 = vset.pattern.permute.xlu0 3
        %407 = vperm.xlu0 %406, %v354
        %v408 = vpop.permute.xlu0 %407
        %v410 = vperm.slane %v401, 0
        %v411 = vmul.f32 %v404, %v410
        %v412 = vmul.f32 %v408, %v410
        %v413 = vadd.f32 %v399, %v411
        %v414 = vadd.f32 %v400, %v412
        %v415 = vld [vmem:[%s2 + $0x4] sm:$0x1]
        %416 = vset.pattern.permute.xlu0 4
        %417 = vperm.xlu0 %416, %v353
        %v418 = vpop.permute.xlu0 %417
        %420 = vset.pattern.permute.xlu0 4
        %421 = vperm.xlu0 %420, %v354
        %v422 = vpop.permute.xlu0 %421
        %v424 = vperm.slane %v415, 0
        %v425 = vmul.f32 %v418, %v424
        %v426 = vmul.f32 %v422, %v424
        %v427 = vadd.f32 %v413, %v425
        %v428 = vadd.f32 %v414, %v426
        %v429 = vld [vmem:[%s2 + $0x5] sm:$0x1]
        %430 = vset.pattern.permute.xlu0 5
        %431 = vperm.xlu0 %430, %v353
        %v432 = vpop.permute.xlu0 %431
        %434 = vset.pattern.permute.xlu0 5
        %435 = vperm.xlu0 %434, %v354
        %v436 = vpop.permute.xlu0 %435
        %v438 = vperm.slane %v429, 0
        %v439 = vmul.f32 %v432, %v438
        %v440 = vmul.f32 %v436, %v438
        %v441 = vadd.f32 %v427, %v439
        %v442 = vadd.f32 %v428, %v440
        %v443 = vld [vmem:[%s2 + $0x6] sm:$0x1]
        %444 = vset.pattern.permute.xlu0 6
        %445 = vperm.xlu0 %444, %v353
        %v446 = vpop.permute.xlu0 %445
        %448 = vset.pattern.permute.xlu0 6
        %449 = vperm.xlu0 %448, %v354
        %v450 = vpop.permute.xlu0 %449
        %v452 = vperm.slane %v443, 0
        %v453 = vmul.f32 %v446, %v452
        %v454 = vmul.f32 %v450, %v452
        %v455 = vadd.f32 %v441, %v453
        %v456 = vadd.f32 %v442, %v454
        %v457 = vld [vmem:[%s2 + $0x7] sm:$0x1]
        %458 = vset.pattern.permute.xlu0 7
        %459 = vperm.xlu0 %458, %v353
        %v460 = vpop.permute.xlu0 %459
        %462 = vset.pattern.permute.xlu0 7
        %463 = vperm.xlu0 %462, %v354
        %v464 = vpop.permute.xlu0 %463
        %v466 = vperm.slane %v457, 0
        %v467 = vmul.f32 %v460, %v466
        %v468 = vmul.f32 %v464, %v466
        %v469 = vadd.f32 %v455, %v467
        %v470 = vadd.f32 %v456, %v468
        %v471 = vmul.f32 %v469, %v469
        %v472 = vmul.f32 %v470, %v470
        %v473 = vmul.f32 %v469, %v471
        %v474 = vmul.f32 %v470, %v472
        %v475 = vmul.f32 %v473, 0.044715
        %v476 = vmul.f32 %v474, 0.044715
        %v477 = vadd.f32 %v469, %v475
        %v478 = vadd.f32 %v470, %v476
        %v479 = vmul.f32 %v477, 0.7978846
        %v480 = vmul.f32 %v478, 0.7978846
        %v481 = vtanh.pop %v479
        %v482 = vtanh.pop %v480
        %v483 = vadd.f32 %v481, 1.0
        %v484 = vadd.f32 %v482, 1.0
        %v485 = vmul.f32 %v483, 0.5
        %v486 = vmul.f32 %v484, 0.5
        %v487 = vmul.f32 %v469, %v485
        %v488 = vmul.f32 %v470, %v486
        %v489 = vlaneseq
        %v490 = vand.u32 %v489, 127
        %v491 = vstv %s352
        %vm492 = vcmp.lt.s32.totalorder %v490, %v491
        %v493 = vld [vmem:[%s7 + $0x8] sm:$0x1]
        %v494 = vld [vmem:[%s7 + $0xa] sm:$0x1]
        %495 = vadd.xlane.f32.xlu0 %v487
        %v496 = vpop.xlane.xlu0 %495
        %497 = vadd.xlane.f32.xlu0 %v488
        %v498 = vpop.xlane.xlu0 %497
        %v499 = vrcp.pop 128.0
        %v500 = vmul.f32 128.0, %v499
        %v501 = vsub.f32 1.0, %v500
        %v502 = vmul.f32 %v499, %v501
        %v503 = vadd.f32 %v499, %v502
        %vm504 = vweird.f32 %v499
        %v505 = vsel %vm504, %v499, %v503
        %v506 = vmul.f32 %v496, %v505
        %v507 = vmul.f32 %v498, %v505
        %v508 = vsub.f32 %v487, %v506
        %v509 = vsub.f32 %v488, %v507
        %v510 = vmul.f32 %v508, %v508
        %v511 = vmul.f32 %v509, %v509
        %512 = vadd.xlane.f32.xlu0 %v510
        %v513 = vpop.xlane.xlu0 %512
        %514 = vadd.xlane.f32.xlu0 %v511
        %v515 = vpop.xlane.xlu0 %514
        %v516 = vmul.f32 %v513, %v505
        %v517 = vmul.f32 %v515, %v505
        %v518 = vadd.f32 %v516, 1e-05
        %v519 = vadd.f32 %v517, 1e-05
        %v520 = vrsqrt.pop %v518
        %v521 = vmul.f32 %v520, %v518
        %v522 = vmul.f32 %v521, %v520
        %v523 = vmul.f32 0.5, %v522
        %v524 = vsub.f32 1.5, %v523
        %v525 = vmul.f32 %v520, %v524
        %vm526 = vweird.f32 %v518
        %vm527 = vweird.f32 %v520
        %vm528 = vmor %vm526, %vm527
        %v529 = vsel %vm528, %v520, %v525
        %v530 = vrsqrt.pop %v519
        %v531 = vmul.f32 %v530, %v519
        %v532 = vmul.f32 %v531, %v530
        %v533 = vmul.f32 0.5, %v532
        %v534 = vsub.f32 1.5, %v533
        %v535 = vmul.f32 %v530, %v534
        %vm536 = vweird.f32 %v519
        %vm537 = vweird.f32 %v530
        %vm538 = vmor %vm536, %vm537
        %v539 = vsel %vm538, %v530, %v535
        %v540 = vmul.f32 %v508, %v529
        %v541 = vmul.f32 %v509, %v539
        %v542 = vperm.slane %v493, 0
        %v543 = vmul.f32 %v540, %v542
        %v544 = vmul.f32 %v541, %v542
        %v545 = vperm.slane %v494, 0
        %v546 = vadd.f32 %v543, %v545
        %v547 = vadd.f32 %v544, %v545
        %v548 = vpack.c.bf16 %v547, %v546
        %v549 = vld [vmem:[#allocation4] sm:$0xff]
        %v550 = vld [vmem:[#allocation4 + $0x8] sm:$0xf]
        %v551 = vld [vmem:[#allocation4 + $0xc] sm:$0xff]
        %v552 = vld [vmem:[#allocation4 + $0x14] sm:$0xf]
        %v553 = vld [vmem:[#allocation4 + $0x18] sm:$0xff]
        %v554 = vld [vmem:[#allocation4 + $0x20] sm:$0xf]
        %v555 = vld [vmem:[#allocation4 + $0x24] sm:$0xff]
        %v556 = vld [vmem:[#allocation4 + $0x2c] sm:$0xf]
        %v557 = vld [vmem:[#allocation4 + $0x30] sm:$0xff]
        %v558 = vld [vmem:[#allocation4 + $0x38] sm:$0xf]
        %v559 = vld [vmem:[#allocation4 + $0x3c] sm:$0xff]
        %v560 = vld [vmem:[#allocation4 + $0x44] sm:$0xf]
        %v561 = vld [vmem:[#allocation4 + $0x48] sm:$0xff]
        %v562 = vld [vmem:[#allocation4 + $0x50] sm:$0xf]
        %v563 = vld [vmem:[#allocation4 + $0x54] sm:$0xff]
        %v564 = vld [vmem:[#allocation4 + $0x5c] sm:$0xf]
        %v565 = vld [vmem:[#allocation4 + $0x60] sm:$0xff]
        %v566 = vld [vmem:[#allocation4 + $0x68] sm:$0xf]
        %v567 = vld [vmem:[#allocation4 + $0x6c] sm:$0xff]
        %v568 = vld [vmem:[#allocation4 + $0x74] sm:$0xf]
        %v569 = vld [vmem:[#allocation4 + $0x78] sm:$0xff]
        %v570 = vld [vmem:[#allocation4 + $0x80] sm:$0xf]
        %v571 = vld [vmem:[#allocation4 + $0x84] sm:$0xff]
        %v572 = vld [vmem:[#allocation4 + $0x8c] sm:$0xf]
        %v573 = vld [vmem:[#allocation4 + $0x90] sm:$0xff]
        %v574 = vld [vmem:[#allocation4 + $0x98] sm:$0xf]
        %v575 = vld [vmem:[#allocation4 + $0x9c] sm:$0xff]
        %v576 = vld [vmem:[#allocation4 + $0xa4] sm:$0xf]
        %v577 = vld [vmem:[#allocation4 + $0xa8] sm:$0xff]
        %v578 = vld [vmem:[#allocation4 + $0xb0] sm:$0xf]
        %v579 = vld [vmem:[#allocation4 + $0xb4] sm:$0xff]
        %v580 = vld [vmem:[#allocation4 + $0xbc] sm:$0xf]
        %v581 = vld [vmem:[%s7] ss:$2 sm:$0x7]
        %v583 = vperm.slane %v581, 0
        %v584 = vperm.slane %v581, 1
        %v585 = vperm.slane %v581, 2
        %v621 = vunpack.c.l.b16 %v549
        %v622 = vunpack.c.h.b16 %v549
        %v623 = vunpack.c.l.b16 %v550
        %v624 = vunpack.c.l.b16 %v551
        %v625 = vunpack.c.h.b16 %v551
        %v626 = vunpack.c.l.b16 %v552
        %v627 = vunpack.c.l.b16 %v553
        %v628 = vunpack.c.h.b16 %v553
        %v629 = vunpack.c.l.b16 %v554
        %v630 = vunpack.c.l.b16 %v555
        %v631 = vunpack.c.h.b16 %v555
        %v632 = vunpack.c.l.b16 %v556
        %v633 = vunpack.c.l.b16 %v557
        %v634 = vunpack.c.h.b16 %v557
        %v635 = vunpack.c.l.b16 %v558
        %v636 = vunpack.c.l.b16 %v559
        %v637 = vunpack.c.h.b16 %v559
        %v638 = vunpack.c.l.b16 %v560
        %v639 = vunpack.c.l.b16 %v561
        %v640 = vunpack.c.h.b16 %v561
        %v641 = vunpack.c.l.b16 %v562
        %v642 = vunpack.c.l.b16 %v563
        %v643 = vunpack.c.h.b16 %v563
        %v644 = vunpack.c.l.b16 %v564
        %v645 = vunpack.c.l.b16 %v565
        %v646 = vunpack.c.h.b16 %v565
        %v647 = vunpack.c.l.b16 %v566
        %v648 = vunpack.c.l.b16 %v567
        %v649 = vunpack.c.h.b16 %v567
        %v650 = vunpack.c.l.b16 %v568
        %v651 = vunpack.c.l.b16 %v569
        %v652 = vunpack.c.h.b16 %v569
        %v653 = vunpack.c.l.b16 %v570
        %v654 = vunpack.c.l.b16 %v571
        %v655 = vunpack.c.h.b16 %v571
        %v656 = vunpack.c.l.b16 %v572
        %v657 = vunpack.c.l.b16 %v573
        %v658 = vunpack.c.h.b16 %v573
        %v659 = vunpack.c.l.b16 %v574
        %v660 = vunpack.c.l.b16 %v575
        %v661 = vunpack.c.h.b16 %v575
        %v662 = vunpack.c.l.b16 %v576
        %v663 = vunpack.c.l.b16 %v577
        %v664 = vunpack.c.h.b16 %v577
        %v665 = vunpack.c.l.b16 %v578
        %v666 = vunpack.c.l.b16 %v579
        %v667 = vunpack.c.h.b16 %v579
        %v668 = vunpack.c.l.b16 %v580
        %v669 = vpack.c.b16 %v624, %v621
        %v670 = vpack.c.b16 %v625, %v622
        %v671 = vpack.c.b16 %v626, %v623
        %v672 = vpack.c.b16 %v630, %v627
        %v673 = vpack.c.b16 %v631, %v628
        %v674 = vpack.c.b16 %v632, %v629
        %v675 = vpack.c.b16 %v636, %v633
        %v676 = vpack.c.b16 %v637, %v634
        %v677 = vpack.c.b16 %v638, %v635
        %v678 = vpack.c.b16 %v642, %v639
        %v679 = vpack.c.b16 %v643, %v640
        %v680 = vpack.c.b16 %v644, %v641
        %v681 = vpack.c.b16 %v648, %v645
        %v682 = vpack.c.b16 %v649, %v646
        %v683 = vpack.c.b16 %v650, %v647
        %v684 = vpack.c.b16 %v654, %v651
        %v685 = vpack.c.b16 %v655, %v652
        %v686 = vpack.c.b16 %v656, %v653
        %v687 = vpack.c.b16 %v660, %v657
        %v688 = vpack.c.b16 %v661, %v658
        %v689 = vpack.c.b16 %v662, %v659
        %v690 = vpack.c.b16 %v666, %v663
        %v691 = vpack.c.b16 %v667, %v664
        %v692 = vpack.c.b16 %v668, %v665
        %717 = vmatpush.bf16.msra.mxu0 %v690
        %718 = vmatpush.bf16.msra.mxu0 %v687
        %719 = vmatpush.bf16.msra.mxu0 %v684
        %720 = vmatpush.bf16.msra.mxu0 %v681
        %721 = vmatpush.bf16.msra.mxu0 %v678
        %722 = vmatpush.bf16.msra.mxu0 %v675
        %723 = vmatpush.bf16.msra.mxu0 %v672
        %724 = vmatpush.bf16.msra.mxu0 %v669
        %725 = vmatmul.bf16.gmra.mxu0 %v548
        %v726 = vpop.f32.mrf.mxu0
        %v727 = vadd.f32 %v583, %v726
        %v728 = vpop.f32.mrf.mxu0
        %v729 = vadd.f32 %v583, %v728
        %730 = vdwg.mxu0
        %731 = vmatpush.bf16.msra.mxu0 %v691
        %732 = vmatpush.bf16.msra.mxu0 %v688
        %733 = vmatpush.bf16.msra.mxu0 %v685
        %734 = vmatpush.bf16.msra.mxu0 %v682
        %735 = vmatpush.bf16.msra.mxu0 %v679
        %736 = vmatpush.bf16.msra.mxu0 %v676
        %737 = vmatpush.bf16.msra.mxu0 %v673
        %738 = vmatpush.bf16.msra.mxu0 %v670
        %739 = vmatmul.bf16.gmra.mxu0 %v548
        %v740 = vpop.f32.mrf.mxu0
        %v741 = vadd.f32 %v584, %v740
        %v742 = vpop.f32.mrf.mxu0
        %v743 = vadd.f32 %v584, %v742
        %744 = vdwg.mxu0
        %745 = vmatpush.bf16.msra.mxu0 %v692
        %746 = vmatpush.bf16.msra.mxu0 %v689
        %747 = vmatpush.bf16.msra.mxu0 %v686
        %748 = vmatpush.bf16.msra.mxu0 %v683
        %749 = vmatpush.bf16.msra.mxu0 %v680
        %750 = vmatpush.bf16.msra.mxu0 %v677
        %751 = vmatpush.bf16.msra.mxu0 %v674
        %752 = vmatpush.bf16.msra.mxu0 %v671
        %753 = vmatmul.bf16.gmra.mxu0 %v548
        %v754 = vpop.f32.mrf.mxu0
        %v755 = vadd.f32 %v585, %v754
        %v756 = vpop.f32.mrf.mxu0
        %v757 = vadd.f32 %v585, %v756
        %758 = vdwg.mxu0
        %v759 = vpack.c.bf16 %v741, %v727
        %v760 = vpack.c.bf16 %v755, %v755
        %v761 = vpack.c.bf16 %v743, %v729
        %v762 = vpack.c.bf16 %v757, %v757
        %v765 = vunpack.c.l.b16 %v759
        %v766 = vunpack.c.l.b16 %v761
        %v767 = vpack.c.b16 %v766, %v765
        %v769 = vunpack.c.h.b16 %v759
        %v770 = vunpack.c.h.b16 %v761
        %v771 = vpack.c.b16 %v770, %v769
        %773 = vmatpush.bf16.xpose.msra.mxu0 0
        %774 = vmatpush.bf16.xpose.msra.mxu0 0
        %775 = vmatpush.bf16.xpose.msra.mxu0 0
        %776 = vmatpush.bf16.xpose.msra.mxu0 0
        %777 = vmatpush.bf16.xpose.msra.mxu0 0
        %778 = vmatpush.bf16.xpose.msra.mxu0 0
        %779 = vmatpush.bf16.xpose.msra.mxu0 0
        %780 = vmatpush.bf16.xpose.msra.mxu0 %v771
        %781 = vmatmul.bf16.gmra.mxu0 %v767
        %v782 = vpop.f32.mrf.mxu0
        %v783 = vadd.f32 0.0, %v782
        %v784 = vpop.f32.mrf.mxu0
        %v785 = vadd.f32 0.0, %v784
        %786 = vdwg.mxu0
        %v787 = vsel %vm492, %v783, -1e+09
        %v788 = vsel %vm492, %v785, -1e+09
        %vm789 = vcmask 130048
        %v790 = vsel %vm789, %v787, -inf
        %791 = vmax.xlane.f32.xlu0 %v790
        %v792 = vpop.xlane.xlu0 %791
        %v793 = vsel %vm789, %v788, -inf
        %794 = vmax.xlane.f32.xlu0 %v793
        %v795 = vpop.xlane.xlu0 %794
        %v796 = vsub.f32 %v787, %v792
        %v797 = vsub.f32 %v788, %v795
        %v798 = vmul.f32 %v796, 1.442695
        %v799 = vpow.pop %v798
        %v800 = vmul.f32 %v797, 1.442695
        %v801 = vpow.pop %v800
        %v802 = vsel %vm789, %v799, 0.0
        %803 = vadd.xlane.f32.xlu0 %v802
        %v804 = vpop.xlane.xlu0 %803
        %v805 = vsel %vm789, %v801, 0.0
        %806 = vadd.xlane.f32.xlu0 %v805
        %v807 = vpop.xlane.xlu0 %806
        %v808 = vrcp.pop %v804
        %v809 = vrcp.pop %v807
        %v810 = vmul.f32 %v799, %v808
        %v811 = vmul.f32 %v801, %v809
        %v812 = vpack.c.bf16 %v811, %v810
        %v815 = vunpack.c.l.b16 %v760
        %v816 = vunpack.c.l.b16 %v762
        %v817 = vpack.c.b16 %v816, %v815
        %v820 = vsel %vm789, %v812, 0
        %822 = vmatpush.bf16.msra.mxu0 0
        %823 = vmatpush.bf16.msra.mxu0 0
        %824 = vmatpush.bf16.msra.mxu0 0
        %825 = vmatpush.bf16.msra.mxu0 0
        %826 = vmatpush.bf16.msra.mxu0 0
        %827 = vmatpush.bf16.msra.mxu0 0
        %828 = vmatpush.bf16.msra.mxu0 0
        %829 = vmatpush.bf16.msra.mxu0 %v817
        %830 = vmatmul.bf16.gmra.mxu0 %v820
        %v831 = vpop.f32.mrf.mxu0
        %v832 = vadd.f32 0.0, %v831
        %v833 = vpop.f32.mrf.mxu0
        %v834 = vadd.f32 0.0, %v833
        %835 = vdwg.mxu0
        %v836 = vpack.c.bf16 %v834, %v832
        %v837 = vld [vmem:[#allocation6] sm:$0xf]
        %v838 = vld [vmem:[#allocation6 + $0x4] sm:$0xf]
        %v839 = vld [vmem:[#allocation6 + $0x8] sm:$0xf]
        %v840 = vld [vmem:[#allocation6 + $0xc] sm:$0xf]
        %v841 = vld [vmem:[#allocation6 + $0x10] sm:$0xf]
        %v842 = vld [vmem:[#allocation6 + $0x14] sm:$0xf]
        %v843 = vld [vmem:[#allocation6 + $0x18] sm:$0xf]
        %v844 = vld [vmem:[#allocation6 + $0x1c] sm:$0xf]
        %v845 = vld [vmem:[#allocation6 + $0x20] sm:$0xf]
        %v846 = vld [vmem:[#allocation6 + $0x24] sm:$0xf]
        %v847 = vld [vmem:[#allocation6 + $0x28] sm:$0xf]
        %v848 = vld [vmem:[#allocation6 + $0x2c] sm:$0xf]
        %v849 = vld [vmem:[#allocation6 + $0x30] sm:$0xf]
        %v850 = vld [vmem:[#allocation6 + $0x34] sm:$0xf]
        %v851 = vld [vmem:[#allocation6 + $0x38] sm:$0xf]
        %v852 = vld [vmem:[#allocation6 + $0x3c] sm:$0xf]
        %v853 = vld [vmem:[%s7 + $0x6] sm:$0x1]
        %v854 = vperm.slane %v853, 0
        %v871 = vunpack.c.l.b16 %v837
        %v872 = vunpack.c.l.b16 %v838
        %v873 = vunpack.c.l.b16 %v839
        %v874 = vunpack.c.l.b16 %v840
        %v875 = vunpack.c.l.b16 %v841
        %v876 = vunpack.c.l.b16 %v842
        %v877 = vunpack.c.l.b16 %v843
        %v878 = vunpack.c.l.b16 %v844
        %v879 = vunpack.c.l.b16 %v845
        %v880 = vunpack.c.l.b16 %v846
        %v881 = vunpack.c.l.b16 %v847
        %v882 = vunpack.c.l.b16 %v848
        %v883 = vunpack.c.l.b16 %v849
        %v884 = vunpack.c.l.b16 %v850
        %v885 = vunpack.c.l.b16 %v851
        %v886 = vunpack.c.l.b16 %v852
        %v887 = vpack.c.b16 %v872, %v871
        %v888 = vpack.c.b16 %v874, %v873
        %v889 = vpack.c.b16 %v876, %v875
        %v890 = vpack.c.b16 %v878, %v877
        %v891 = vpack.c.b16 %v880, %v879
        %v892 = vpack.c.b16 %v882, %v881
        %v893 = vpack.c.b16 %v884, %v883
        %v894 = vpack.c.b16 %v886, %v885
        %903 = vmatpush.bf16.msra.mxu0 %v894
        %904 = vmatpush.bf16.msra.mxu0 %v893
        %905 = vmatpush.bf16.msra.mxu0 %v892
        %906 = vmatpush.bf16.msra.mxu0 %v891
        %907 = vmatpush.bf16.msra.mxu0 %v890
        %908 = vmatpush.bf16.msra.mxu0 %v889
        %909 = vmatpush.bf16.msra.mxu0 %v888
        %910 = vmatpush.bf16.msra.mxu0 %v887
        %911 = vmatmul.bf16.gmra.mxu0 %v836
        %v912 = vpop.f32.mrf.mxu0
        %v913 = vadd.f32 %v854, %v912
        %v914 = vpop.f32.mrf.mxu0
        %v915 = vadd.f32 %v854, %v914
        %916 = vdwg.mxu0
        %v917 = vadd.f32 %v487, %v913
        %v918 = vadd.f32 %v488, %v915
        %v919 = vld [vmem:[%s7 + $0xc] sm:$0x1]
        %v920 = vld [vmem:[%s7 + $0xe] sm:$0x1]
        %921 = vadd.xlane.f32.xlu0 %v917
        %v922 = vpop.xlane.xlu0 %921
        %923 = vadd.xlane.f32.xlu0 %v918
        %v924 = vpop.xlane.xlu0 %923
        %v925 = vmul.f32 %v922, %v505
        %v926 = vmul.f32 %v924, %v505
        %v927 = vsub.f32 %v917, %v925
        %v928 = vsub.f32 %v918, %v926
        %v929 = vmul.f32 %v927, %v927
        %v930 = vmul.f32 %v928, %v928
        %931 = vadd.xlane.f32.xlu0 %v929
        %v932 = vpop.xlane.xlu0 %931
        %933 = vadd.xlane.f32.xlu0 %v930
        %v934 = vpop.xlane.xlu0 %933
        %v935 = vmul.f32 %v932, %v505
        %v936 = vmul.f32 %v934, %v505
        %v937 = vadd.f32 %v935, 1e-05
        %v938 = vadd.f32 %v936, 1e-05
        %v939 = vrsqrt.pop %v937
        %v940 = vmul.f32 %v939, %v937
        %v941 = vmul.f32 %v940, %v939
        %v942 = vmul.f32 0.5, %v941
        %v943 = vsub.f32 1.5, %v942
        %v944 = vmul.f32 %v939, %v943
        %vm945 = vweird.f32 %v937
        %vm946 = vweird.f32 %v939
        %vm947 = vmor %vm945, %vm946
        %v948 = vsel %vm947, %v939, %v944
        %v949 = vrsqrt.pop %v938
        %v950 = vmul.f32 %v949, %v938
        %v951 = vmul.f32 %v950, %v949
        %v952 = vmul.f32 0.5, %v951
        %v953 = vsub.f32 1.5, %v952
        %v954 = vmul.f32 %v949, %v953
        %vm955 = vweird.f32 %v938
        %vm956 = vweird.f32 %v949
        %vm957 = vmor %vm955, %vm956
        %v958 = vsel %vm957, %v949, %v954
        %v959 = vmul.f32 %v927, %v948
        %v960 = vmul.f32 %v928, %v958
        %v961 = vperm.slane %v919, 0
        %v962 = vmul.f32 %v959, %v961
        %v963 = vmul.f32 %v960, %v961
        %v964 = vperm.slane %v920, 0
        %v965 = vadd.f32 %v962, %v964
        %v966 = vadd.f32 %v963, %v964
        %v967 = vpack.c.bf16 %v966, %v965
        %v968 = vld [vmem:[#allocation8] sm:$0xff]
        %v969 = vld [vmem:[#allocation8 + $0x8] sm:$0xff]
        %v970 = vld [vmem:[#allocation8 + $0x10] sm:$0xff]
        %v971 = vld [vmem:[#allocation8 + $0x18] sm:$0xff]
        %v972 = vld [vmem:[#allocation8 + $0x20] sm:$0xff]
        %v973 = vld [vmem:[#allocation8 + $0x28] sm:$0xff]
        %v974 = vld [vmem:[#allocation8 + $0x30] sm:$0xff]
        %v975 = vld [vmem:[#allocation8 + $0x38] sm:$0xff]
        %v976 = vld [vmem:[#allocation8 + $0x40] sm:$0xff]
        %v977 = vld [vmem:[#allocation8 + $0x48] sm:$0xff]
        %v978 = vld [vmem:[#allocation8 + $0x50] sm:$0xff]
        %v979 = vld [vmem:[#allocation8 + $0x58] sm:$0xff]
        %v980 = vld [vmem:[#allocation8 + $0x60] sm:$0xff]
        %v981 = vld [vmem:[#allocation8 + $0x68] sm:$0xff]
        %v982 = vld [vmem:[#allocation8 + $0x70] sm:$0xff]
        %v983 = vld [vmem:[#allocation8 + $0x78] sm:$0xff]
        %s984 = scalar_lea.vmem %s7, 16
        %v985 = vld [vmem:[%s984] ss:$2 sm:$0x3]
        %v987 = vperm.slane %v985, 0
        %v988 = vperm.slane %v985, 1
        %v1007 = vunpack.c.l.b16 %v968
        %v1008 = vunpack.c.h.b16 %v968
        %v1009 = vunpack.c.l.b16 %v969
        %v1010 = vunpack.c.h.b16 %v969
        %v1011 = vunpack.c.l.b16 %v970
        %v1012 = vunpack.c.h.b16 %v970
        %v1013 = vunpack.c.l.b16 %v971
        %v1014 = vunpack.c.h.b16 %v971
        %v1015 = vunpack.c.l.b16 %v972
        %v1016 = vunpack.c.h.b16 %v972
        %v1017 = vunpack.c.l.b16 %v973
        %v1018 = vunpack.c.h.b16 %v973
        %v1019 = vunpack.c.l.b16 %v974
        %v1020 = vunpack.c.h.b16 %v974
        %v1021 = vunpack.c.l.b16 %v975
        %v1022 = vunpack.c.h.b16 %v975
        %v1023 = vunpack.c.l.b16 %v976
        %v1024 = vunpack.c.h.b16 %v976
        %v1025 = vunpack.c.l.b16 %v977
        %v1026 = vunpack.c.h.b16 %v977
        %v1027 = vunpack.c.l.b16 %v978
        %v1028 = vunpack.c.h.b16 %v978
        %v1029 = vunpack.c.l.b16 %v979
        %v1030 = vunpack.c.h.b16 %v979
        %v1031 = vunpack.c.l.b16 %v980
        %v1032 = vunpack.c.h.b16 %v980
        %v1033 = vunpack.c.l.b16 %v981
        %v1034 = vunpack.c.h.b16 %v981
        %v1035 = vunpack.c.l.b16 %v982
        %v1036 = vunpack.c.h.b16 %v982
        %v1037 = vunpack.c.l.b16 %v983
        %v1038 = vunpack.c.h.b16 %v983
        %v1039 = vpack.c.b16 %v1009, %v1007
        %v1040 = vpack.c.b16 %v1010, %v1008
        %v1041 = vpack.c.b16 %v1013, %v1011
        %v1042 = vpack.c.b16 %v1014, %v1012
        %v1043 = vpack.c.b16 %v1017, %v1015
        %v1044 = vpack.c.b16 %v1018, %v1016
        %v1045 = vpack.c.b16 %v1021, %v1019
        %v1046 = vpack.c.b16 %v1022, %v1020
        %v1047 = vpack.c.b16 %v1025, %v1023
        %v1048 = vpack.c.b16 %v1026, %v1024
        %v1049 = vpack.c.b16 %v1029, %v1027
        %v1050 = vpack.c.b16 %v1030, %v1028
        %v1051 = vpack.c.b16 %v1033, %v1031
        %v1052 = vpack.c.b16 %v1034, %v1032
        %v1053 = vpack.c.b16 %v1037, %v1035
        %v1054 = vpack.c.b16 %v1038, %v1036
        %1071 = vmatpush.bf16.msra.mxu0 %v1053
        %1072 = vmatpush.bf16.msra.mxu0 %v1051
        %1073 = vmatpush.bf16.msra.mxu0 %v1049
        %1074 = vmatpush.bf16.msra.mxu0 %v1047
        %1075 = vmatpush.bf16.msra.mxu0 %v1045
        %1076 = vmatpush.bf16.msra.mxu0 %v1043
        %1077 = vmatpush.bf16.msra.mxu0 %v1041
        %1078 = vmatpush.bf16.msra.mxu0 %v1039
        %1079 = vmatmul.bf16.gmra.mxu0 %v967
        %v1080 = vpop.f32.mrf.mxu0
        %v1081 = vadd.f32 %v987, %v1080
        %v1082 = vpop.f32.mrf.mxu0
        %v1083 = vadd.f32 %v987, %v1082
        %1084 = vdwg.mxu0
        %1085 = vmatpush.bf16.msra.mxu0 %v1054
        %1086 = vmatpush.bf16.msra.mxu0 %v1052
        %1087 = vmatpush.bf16.msra.mxu0 %v1050
        %1088 = vmatpush.bf16.msra.mxu0 %v1048
        %1089 = vmatpush.bf16.msra.mxu0 %v1046
        %1090 = vmatpush.bf16.msra.mxu0 %v1044
        %1091 = vmatpush.bf16.msra.mxu0 %v1042
        %1092 = vmatpush.bf16.msra.mxu0 %v1040
        %1093 = vmatmul.bf16.gmra.mxu0 %v967
        %v1094 = vpop.f32.mrf.mxu0
        %v1095 = vadd.f32 %v988, %v1094
        %v1096 = vpop.f32.mrf.mxu0
        %v1097 = vadd.f32 %v988, %v1096
        %1098 = vdwg.mxu0
        %v1099 = vmul.f32 %v1081, %v1081
        %v1100 = vmul.f32 %v1095, %v1095
        %v1101 = vmul.f32 %v1083, %v1083
        %v1102 = vmul.f32 %v1097, %v1097
        %v1103 = vmul.f32 %v1081, %v1099
        %v1104 = vmul.f32 %v1095, %v1100
        %v1105 = vmul.f32 %v1083, %v1101
        %v1106 = vmul.f32 %v1097, %v1102
        %v1107 = vmul.f32 %v1103, 0.044715
        %v1108 = vmul.f32 %v1104, 0.044715
        %v1109 = vmul.f32 %v1105, 0.044715
        %v1110 = vmul.f32 %v1106, 0.044715
        %v1111 = vadd.f32 %v1081, %v1107
        %v1112 = vadd.f32 %v1095, %v1108
        %v1113 = vadd.f32 %v1083, %v1109
        %v1114 = vadd.f32 %v1097, %v1110
        %v1115 = vmul.f32 %v1111, 0.7978846
        %v1116 = vmul.f32 %v1112, 0.7978846
        %v1117 = vmul.f32 %v1113, 0.7978846
        %v1118 = vmul.f32 %v1114, 0.7978846
        %v1119 = vtanh.pop %v1115
        %v1120 = vtanh.pop %v1116
        %v1121 = vtanh.pop %v1117
        %v1122 = vtanh.pop %v1118
        %v1123 = vadd.f32 %v1119, 1.0
        %v1124 = vadd.f32 %v1120, 1.0
        %v1125 = vadd.f32 %v1121, 1.0
        %v1126 = vadd.f32 %v1122, 1.0
        %v1127 = vmul.f32 %v1123, 0.5
        %v1128 = vmul.f32 %v1124, 0.5
        %v1129 = vmul.f32 %v1125, 0.5
        %v1130 = vmul.f32 %v1126, 0.5
        %v1131 = vmul.f32 %v1081, %v1127
        %v1132 = vmul.f32 %v1095, %v1128
        %v1133 = vmul.f32 %v1083, %v1129
        %v1134 = vmul.f32 %v1097, %v1130
        %v1135 = vpack.c.bf16 %v1133, %v1131
        %v1136 = vpack.c.bf16 %v1134, %v1132
        %v1137 = vld [vmem:[#allocation9] sm:$0xf]
        %v1138 = vld [vmem:[#allocation9 + $0x4] sm:$0xf]
        %v1139 = vld [vmem:[#allocation9 + $0x8] sm:$0xf]
        %v1140 = vld [vmem:[#allocation9 + $0xc] sm:$0xf]
        %v1141 = vld [vmem:[#allocation9 + $0x10] sm:$0xf]
        %v1142 = vld [vmem:[#allocation9 + $0x14] sm:$0xf]
        %v1143 = vld [vmem:[#allocation9 + $0x18] sm:$0xf]
        %v1144 = vld [vmem:[#allocation9 + $0x1c] sm:$0xf]
        %v1145 = vld [vmem:[#allocation9 + $0x20] sm:$0xf]
        %v1146 = vld [vmem:[#allocation9 + $0x24] sm:$0xf]
        %v1147 = vld [vmem:[#allocation9 + $0x28] sm:$0xf]
        %v1148 = vld [vmem:[#allocation9 + $0x2c] sm:$0xf]
        %v1149 = vld [vmem:[#allocation9 + $0x30] sm:$0xf]
        %v1150 = vld [vmem:[#allocation9 + $0x34] sm:$0xf]
        %v1151 = vld [vmem:[#allocation9 + $0x38] sm:$0xf]
        %v1152 = vld [vmem:[#allocation9 + $0x3c] sm:$0xf]
        %v1153 = vld [vmem:[#allocation9 + $0x40] sm:$0xf]
        %v1154 = vld [vmem:[#allocation9 + $0x44] sm:$0xf]
        %v1155 = vld [vmem:[#allocation9 + $0x48] sm:$0xf]
        %v1156 = vld [vmem:[#allocation9 + $0x4c] sm:$0xf]
        %v1157 = vld [vmem:[#allocation9 + $0x50] sm:$0xf]
        %v1158 = vld [vmem:[#allocation9 + $0x54] sm:$0xf]
        %v1159 = vld [vmem:[#allocation9 + $0x58] sm:$0xf]
        %v1160 = vld [vmem:[#allocation9 + $0x5c] sm:$0xf]
        %v1161 = vld [vmem:[#allocation9 + $0x60] sm:$0xf]
        %v1162 = vld [vmem:[#allocation9 + $0x64] sm:$0xf]
        %v1163 = vld [vmem:[#allocation9 + $0x68] sm:$0xf]
        %v1164 = vld [vmem:[#allocation9 + $0x6c] sm:$0xf]
        %v1165 = vld [vmem:[#allocation9 + $0x70] sm:$0xf]
        %v1166 = vld [vmem:[#allocation9 + $0x74] sm:$0xf]
        %v1167 = vld [vmem:[#allocation9 + $0x78] sm:$0xf]
        %v1168 = vld [vmem:[#allocation9 + $0x7c] sm:$0xf]
        %v1169 = vld [vmem:[%s7 + $0x14] sm:$0x1]
        %v1170 = vperm.slane %v1169, 0
        %v1203 = vunpack.c.l.b16 %v1137
        %v1204 = vunpack.c.l.b16 %v1138
        %v1205 = vunpack.c.l.b16 %v1139
        %v1206 = vunpack.c.l.b16 %v1140
        %v1207 = vunpack.c.l.b16 %v1141
        %v1208 = vunpack.c.l.b16 %v1142
        %v1209 = vunpack.c.l.b16 %v1143
        %v1210 = vunpack.c.l.b16 %v1144
        %v1211 = vunpack.c.l.b16 %v1145
        %v1212 = vunpack.c.l.b16 %v1146
        %v1213 = vunpack.c.l.b16 %v1147
        %v1214 = vunpack.c.l.b16 %v1148
        %v1215 = vunpack.c.l.b16 %v1149
        %v1216 = vunpack.c.l.b16 %v1150
        %v1217 = vunpack.c.l.b16 %v1151
        %v1218 = vunpack.c.l.b16 %v1152
        %v1219 = vunpack.c.l.b16 %v1153
        %v1220 = vunpack.c.l.b16 %v1154
        %v1221 = vunpack.c.l.b16 %v1155
        %v1222 = vunpack.c.l.b16 %v1156
        %v1223 = vunpack.c.l.b16 %v1157
        %v1224 = vunpack.c.l.b16 %v1158
        %v1225 = vunpack.c.l.b16 %v1159
        %v1226 = vunpack.c.l.b16 %v1160
        %v1227 = vunpack.c.l.b16 %v1161
        %v1228 = vunpack.c.l.b16 %v1162
        %v1229 = vunpack.c.l.b16 %v1163
        %v1230 = vunpack.c.l.b16 %v1164
        %v1231 = vunpack.c.l.b16 %v1165
        %v1232 = vunpack.c.l.b16 %v1166
        %v1233 = vunpack.c.l.b16 %v1167
        %v1234 = vunpack.c.l.b16 %v1168
        %v1235 = vpack.c.b16 %v1204, %v1203
        %v1236 = vpack.c.b16 %v1206, %v1205
        %v1237 = vpack.c.b16 %v1208, %v1207
        %v1238 = vpack.c.b16 %v1210, %v1209
        %v1239 = vpack.c.b16 %v1212, %v1211
        %v1240 = vpack.c.b16 %v1214, %v1213
        %v1241 = vpack.c.b16 %v1216, %v1215
        %v1242 = vpack.c.b16 %v1218, %v1217
        %v1243 = vpack.c.b16 %v1220, %v1219
        %v1244 = vpack.c.b16 %v1222, %v1221
        %v1245 = vpack.c.b16 %v1224, %v1223
        %v1246 = vpack.c.b16 %v1226, %v1225
        %v1247 = vpack.c.b16 %v1228, %v1227
        %v1248 = vpack.c.b16 %v1230, %v1229
        %v1249 = vpack.c.b16 %v1232, %v1231
        %v1250 = vpack.c.b16 %v1234, %v1233
        %1267 = vmatpush.bf16.msra.mxu0 %v1242
        %1268 = vmatpush.bf16.msra.mxu0 %v1241
        %1269 = vmatpush.bf16.msra.mxu0 %v1240
        %1270 = vmatpush.bf16.msra.mxu0 %v1239
        %1271 = vmatpush.bf16.msra.mxu0 %v1238
        %1272 = vmatpush.bf16.msra.mxu0 %v1237
        %1273 = vmatpush.bf16.msra.mxu0 %v1236
        %1274 = vmatpush.bf16.msra.mxu0 %v1235
        %1275 = vmatmul.bf16.gmra.mxu0 %v1135
        %v1276 = vpop.f32.mrf.mxu0
        %v1277 = vadd.f32 %v1170, %v1276
        %v1278 = vpop.f32.mrf.mxu0
        %v1279 = vadd.f32 %v1170, %v1278
        %1280 = vdwg.mxu0
        %1281 = vmatpush.bf16.msra.mxu0 %v1250
        %1282 = vmatpush.bf16.msra.mxu0 %v1249
        %1283 = vmatpush.bf16.msra.mxu0 %v1248
        %1284 = vmatpush.bf16.msra.mxu0 %v1247
        %1285 = vmatpush.bf16.msra.mxu0 %v1246
        %1286 = vmatpush.bf16.msra.mxu0 %v1245
        %1287 = vmatpush.bf16.msra.mxu0 %v1244
        %1288 = vmatpush.bf16.msra.mxu0 %v1243
        %1289 = vmatmul.bf16.gmra.mxu0 %v1136
        %v1290 = vpop.f32.mrf.mxu0
        %v1291 = vadd.f32 %v1277, %v1290
        %v1292 = vpop.f32.mrf.mxu0
        %v1293 = vadd.f32 %v1279, %v1292
        %1294 = vdwg.mxu0
        %v1295 = vadd.f32 %v917, %v1291
        %v1296 = vadd.f32 %v918, %v1293
        %v1297 = vld [vmem:[%s7 + $0x9] sm:$0x1]
        %v1298 = vld [vmem:[%s7 + $0xb] sm:$0x1]
        %1299 = vadd.xlane.f32.xlu0 %v1295
        %v1300 = vpop.xlane.xlu0 %1299
        %1301 = vadd.xlane.f32.xlu0 %v1296
        %v1302 = vpop.xlane.xlu0 %1301
        %v1303 = vmul.f32 %v1300, %v505
        %v1304 = vmul.f32 %v1302, %v505
        %v1305 = vsub.f32 %v1295, %v1303
        %v1306 = vsub.f32 %v1296, %v1304
        %v1307 = vmul.f32 %v1305, %v1305
        %v1308 = vmul.f32 %v1306, %v1306
        %1309 = vadd.xlane.f32.xlu0 %v1307
        %v1310 = vpop.xlane.xlu0 %1309
        %1311 = vadd.xlane.f32.xlu0 %v1308
        %v1312 = vpop.xlane.xlu0 %1311
        %v1313 = vmul.f32 %v1310, %v505
        %v1314 = vmul.f32 %v1312, %v505
        %v1315 = vadd.f32 %v1313, 1e-05
        %v1316 = vadd.f32 %v1314, 1e-05
        %v1317 = vrsqrt.pop %v1315
        %v1318 = vmul.f32 %v1317, %v1315
        %v1319 = vmul.f32 %v1318, %v1317
        %v1320 = vmul.f32 0.5, %v1319
        %v1321 = vsub.f32 1.5, %v1320
        %v1322 = vmul.f32 %v1317, %v1321
        %vm1323 = vweird.f32 %v1315
        %vm1324 = vweird.f32 %v1317
        %vm1325 = vmor %vm1323, %vm1324
        %v1326 = vsel %vm1325, %v1317, %v1322
        %v1327 = vrsqrt.pop %v1316
        %v1328 = vmul.f32 %v1327, %v1316
        %v1329 = vmul.f32 %v1328, %v1327
        %v1330 = vmul.f32 0.5, %v1329
        %v1331 = vsub.f32 1.5, %v1330
        %v1332 = vmul.f32 %v1327, %v1331
        %vm1333 = vweird.f32 %v1316
        %vm1334 = vweird.f32 %v1327
        %vm1335 = vmor %vm1333, %vm1334
        %v1336 = vsel %vm1335, %v1327, %v1332
        %v1337 = vmul.f32 %v1305, %v1326
        %v1338 = vmul.f32 %v1306, %v1336
        %v1339 = vperm.slane %v1297, 0
        %v1340 = vmul.f32 %v1337, %v1339
        %v1341 = vmul.f32 %v1338, %v1339
        %v1342 = vperm.slane %v1298, 0
        %v1343 = vadd.f32 %v1340, %v1342
        %v1344 = vadd.f32 %v1341, %v1342
        %v1345 = vpack.c.bf16 %v1344, %v1343
        %s1346 = scalar_lea.vmem [#allocation4], 192
        %v1347 = vld [vmem:[%s1346] sm:$0xff]
        %v1348 = vld [vmem:[%s1346 + $0x8] sm:$0xf]
        %v1349 = vld [vmem:[%s1346 + $0xc] sm:$0xff]
        %v1350 = vld [vmem:[%s1346 + $0x14] sm:$0xf]
        %v1351 = vld [vmem:[%s1346 + $0x18] sm:$0xff]
        %v1352 = vld [vmem:[%s1346 + $0x20] sm:$0xf]
        %v1353 = vld [vmem:[%s1346 + $0x24] sm:$0xff]
        %v1354 = vld [vmem:[%s1346 + $0x2c] sm:$0xf]
        %v1355 = vld [vmem:[%s1346 + $0x30] sm:$0xff]
        %v1356 = vld [vmem:[%s1346 + $0x38] sm:$0xf]
        %v1357 = vld [vmem:[%s1346 + $0x3c] sm:$0xff]
        %v1358 = vld [vmem:[%s1346 + $0x44] sm:$0xf]
        %v1359 = vld [vmem:[%s1346 + $0x48] sm:$0xff]
        %v1360 = vld [vmem:[%s1346 + $0x50] sm:$0xf]
        %v1361 = vld [vmem:[%s1346 + $0x54] sm:$0xff]
        %v1362 = vld [vmem:[%s1346 + $0x5c] sm:$0xf]
        %v1363 = vld [vmem:[%s1346 + $0x60] sm:$0xff]
        %v1364 = vld [vmem:[%s1346 + $0x68] sm:$0xf]
        %v1365 = vld [vmem:[%s1346 + $0x6c] sm:$0xff]
        %v1366 = vld [vmem:[%s1346 + $0x74] sm:$0xf]
        %v1367 = vld [vmem:[%s1346 + $0x78] sm:$0xff]
        %v1368 = vld [vmem:[%s1346 + $0x80] sm:$0xf]
        %v1369 = vld [vmem:[%s1346 + $0x84] sm:$0xff]
        %v1370 = vld [vmem:[%s1346 + $0x8c] sm:$0xf]
        %v1371 = vld [vmem:[%s1346 + $0x90] sm:$0xff]
        %v1372 = vld [vmem:[%s1346 + $0x98] sm:$0xf]
        %v1373 = vld [vmem:[%s1346 + $0x9c] sm:$0xff]
        %v1374 = vld [vmem:[%s1346 + $0xa4] sm:$0xf]
        %v1375 = vld [vmem:[%s1346 + $0xa8] sm:$0xff]
        %v1376 = vld [vmem:[%s1346 + $0xb0] sm:$0xf]
        %v1377 = vld [vmem:[%s1346 + $0xb4] sm:$0xff]
        %v1378 = vld [vmem:[%s1346 + $0xbc] sm:$0xf]
        %s1379 = scalar_lea.vmem %s7, 1
        %v1380 = vld [vmem:[%s1379] ss:$2 sm:$0x7]
        %v1382 = vperm.slane %v1380, 0
        %v1383 = vperm.slane %v1380, 1
        %v1384 = vperm.slane %v1380, 2
        %v1420 = vunpack.c.l.b16 %v1347
        %v1421 = vunpack.c.h.b16 %v1347
        %v1422 = vunpack.c.l.b16 %v1348
        %v1423 = vunpack.c.l.b16 %v1349
        %v1424 = vunpack.c.h.b16 %v1349
        %v1425 = vunpack.c.l.b16 %v1350
        %v1426 = vunpack.c.l.b16 %v1351
        %v1427 = vunpack.c.h.b16 %v1351
        %v1428 = vunpack.c.l.b16 %v1352
        %v1429 = vunpack.c.l.b16 %v1353
        %v1430 = vunpack.c.h.b16 %v1353
        %v1431 = vunpack.c.l.b16 %v1354
        %v1432 = vunpack.c.l.b16 %v1355
        %v1433 = vunpack.c.h.b16 %v1355
        %v1434 = vunpack.c.l.b16 %v1356
        %v1435 = vunpack.c.l.b16 %v1357
        %v1436 = vunpack.c.h.b16 %v1357
        %v1437 = vunpack.c.l.b16 %v1358
        %v1438 = vunpack.c.l.b16 %v1359
        %v1439 = vunpack.c.h.b16 %v1359
        %v1440 = vunpack.c.l.b16 %v1360
        %v1441 = vunpack.c.l.b16 %v1361
        %v1442 = vunpack.c.h.b16 %v1361
        %v1443 = vunpack.c.l.b16 %v1362
        %v1444 = vunpack.c.l.b16 %v1363
        %v1445 = vunpack.c.h.b16 %v1363
        %v1446 = vunpack.c.l.b16 %v1364
        %v1447 = vunpack.c.l.b16 %v1365
        %v1448 = vunpack.c.h.b16 %v1365
        %v1449 = vunpack.c.l.b16 %v1366
        %v1450 = vunpack.c.l.b16 %v1367
        %v1451 = vunpack.c.h.b16 %v1367
        %v1452 = vunpack.c.l.b16 %v1368
        %v1453 = vunpack.c.l.b16 %v1369
        %v1454 = vunpack.c.h.b16 %v1369
        %v1455 = vunpack.c.l.b16 %v1370
        %v1456 = vunpack.c.l.b16 %v1371
        %v1457 = vunpack.c.h.b16 %v1371
        %v1458 = vunpack.c.l.b16 %v1372
        %v1459 = vunpack.c.l.b16 %v1373
        %v1460 = vunpack.c.h.b16 %v1373
        %v1461 = vunpack.c.l.b16 %v1374
        %v1462 = vunpack.c.l.b16 %v1375
        %v1463 = vunpack.c.h.b16 %v1375
        %v1464 = vunpack.c.l.b16 %v1376
        %v1465 = vunpack.c.l.b16 %v1377
        %v1466 = vunpack.c.h.b16 %v1377
        %v1467 = vunpack.c.l.b16 %v1378
        %v1468 = vpack.c.b16 %v1423, %v1420
        %v1469 = vpack.c.b16 %v1424, %v1421
        %v1470 = vpack.c.b16 %v1425, %v1422
        %v1471 = vpack.c.b16 %v1429, %v1426
        %v1472 = vpack.c.b16 %v1430, %v1427
        %v1473 = vpack.c.b16 %v1431, %v1428
        %v1474 = vpack.c.b16 %v1435, %v1432
        %v1475 = vpack.c.b16 %v1436, %v1433
        %v1476 = vpack.c.b16 %v1437, %v1434
        %v1477 = vpack.c.b16 %v1441, %v1438
        %v1478 = vpack.c.b16 %v1442, %v1439
        %v1479 = vpack.c.b16 %v1443, %v1440
        %v1480 = vpack.c.b16 %v1447, %v1444
        %v1481 = vpack.c.b16 %v1448, %v1445
        %v1482 = vpack.c.b16 %v1449, %v1446
        %v1483 = vpack.c.b16 %v1453, %v1450
        %v1484 = vpack.c.b16 %v1454, %v1451
        %v1485 = vpack.c.b16 %v1455, %v1452
        %v1486 = vpack.c.b16 %v1459, %v1456
        %v1487 = vpack.c.b16 %v1460, %v1457
        %v1488 = vpack.c.b16 %v1461, %v1458
        %v1489 = vpack.c.b16 %v1465, %v1462
        %v1490 = vpack.c.b16 %v1466, %v1463
        %v1491 = vpack.c.b16 %v1467, %v1464
        %1516 = vmatpush.bf16.msra.mxu0 %v1489
        %1517 = vmatpush.bf16.msra.mxu0 %v1486
        %1518 = vmatpush.bf16.msra.mxu0 %v1483
        %1519 = vmatpush.bf16.msra.mxu0 %v1480
        %1520 = vmatpush.bf16.msra.mxu0 %v1477
        %1521 = vmatpush.bf16.msra.mxu0 %v1474
        %1522 = vmatpush.bf16.msra.mxu0 %v1471
        %1523 = vmatpush.bf16.msra.mxu0 %v1468
        %1524 = vmatmul.bf16.gmra.mxu0 %v1345
        %v1525 = vpop.f32.mrf.mxu0
        %v1526 = vadd.f32 %v1382, %v1525
        %v1527 = vpop.f32.mrf.mxu0
        %v1528 = vadd.f32 %v1382, %v1527
        %1529 = vdwg.mxu0
        %1530 = vmatpush.bf16.msra.mxu0 %v1490
        %1531 = vmatpush.bf16.msra.mxu0 %v1487
        %1532 = vmatpush.bf16.msra.mxu0 %v1484
        %1533 = vmatpush.bf16.msra.mxu0 %v1481
        %1534 = vmatpush.bf16.msra.mxu0 %v1478
        %1535 = vmatpush.bf16.msra.mxu0 %v1475
        %1536 = vmatpush.bf16.msra.mxu0 %v1472
        %1537 = vmatpush.bf16.msra.mxu0 %v1469
        %1538 = vmatmul.bf16.gmra.mxu0 %v1345
        %v1539 = vpop.f32.mrf.mxu0
        %v1540 = vadd.f32 %v1383, %v1539
        %v1541 = vpop.f32.mrf.mxu0
        %v1542 = vadd.f32 %v1383, %v1541
        %1543 = vdwg.mxu0
        %1544 = vmatpush.bf16.msra.mxu0 %v1491
        %1545 = vmatpush.bf16.msra.mxu0 %v1488
        %1546 = vmatpush.bf16.msra.mxu0 %v1485
        %1547 = vmatpush.bf16.msra.mxu0 %v1482
        %1548 = vmatpush.bf16.msra.mxu0 %v1479
        %1549 = vmatpush.bf16.msra.mxu0 %v1476
        %1550 = vmatpush.bf16.msra.mxu0 %v1473
        %1551 = vmatpush.bf16.msra.mxu0 %v1470
        %1552 = vmatmul.bf16.gmra.mxu0 %v1345
        %v1553 = vpop.f32.mrf.mxu0
        %v1554 = vadd.f32 %v1384, %v1553
        %v1555 = vpop.f32.mrf.mxu0
        %v1556 = vadd.f32 %v1384, %v1555
        %1557 = vdwg.mxu0
        %v1558 = vpack.c.bf16 %v1540, %v1526
        %v1559 = vpack.c.bf16 %v1554, %v1554
        %v1560 = vpack.c.bf16 %v1542, %v1528
        %v1561 = vpack.c.bf16 %v1556, %v1556
        %v1564 = vunpack.c.l.b16 %v1558
        %v1565 = vunpack.c.l.b16 %v1560
        %v1566 = vpack.c.b16 %v1565, %v1564
        %v1568 = vunpack.c.h.b16 %v1558
        %v1569 = vunpack.c.h.b16 %v1560
        %v1570 = vpack.c.b16 %v1569, %v1568
        %1572 = vmatpush.bf16.xpose.msra.mxu0 0
        %1573 = vmatpush.bf16.xpose.msra.mxu0 0
        %1574 = vmatpush.bf16.xpose.msra.mxu0 0
        %1575 = vmatpush.bf16.xpose.msra.mxu0 0
        %1576 = vmatpush.bf16.xpose.msra.mxu0 0
        %1577 = vmatpush.bf16.xpose.msra.mxu0 0
        %1578 = vmatpush.bf16.xpose.msra.mxu0 0
        %1579 = vmatpush.bf16.xpose.msra.mxu0 %v1570
        %1580 = vmatmul.bf16.gmra.mxu0 %v1566
        %v1581 = vpop.f32.mrf.mxu0
        %v1582 = vadd.f32 0.0, %v1581
        %v1583 = vpop.f32.mrf.mxu0
        %v1584 = vadd.f32 0.0, %v1583
        %1585 = vdwg.mxu0
        %v1586 = vsel %vm492, %v1582, -1e+09
        %v1587 = vsel %vm492, %v1584, -1e+09
        %v1588 = vsel %vm789, %v1586, -inf
        %1589 = vmax.xlane.f32.xlu0 %v1588
        %v1590 = vpop.xlane.xlu0 %1589
        %v1591 = vsel %vm789, %v1587, -inf
        %1592 = vmax.xlane.f32.xlu0 %v1591
        %v1593 = vpop.xlane.xlu0 %1592
        %v1594 = vsub.f32 %v1586, %v1590
        %v1595 = vsub.f32 %v1587, %v1593
        %v1596 = vmul.f32 %v1594, 1.442695
        %v1597 = vpow.pop %v1596
        %v1598 = vmul.f32 %v1595, 1.442695
        %v1599 = vpow.pop %v1598
        %v1600 = vsel %vm789, %v1597, 0.0
        %1601 = vadd.xlane.f32.xlu0 %v1600
        %v1602 = vpop.xlane.xlu0 %1601
        %v1603 = vsel %vm789, %v1599, 0.0
        %1604 = vadd.xlane.f32.xlu0 %v1603
        %v1605 = vpop.xlane.xlu0 %1604
        %v1606 = vrcp.pop %v1602
        %v1607 = vrcp.pop %v1605
        %v1608 = vmul.f32 %v1597, %v1606
        %v1609 = vmul.f32 %v1599, %v1607
        %v1610 = vpack.c.bf16 %v1609, %v1608
        %v1613 = vunpack.c.l.b16 %v1559
        %v1614 = vunpack.c.l.b16 %v1561
        %v1615 = vpack.c.b16 %v1614, %v1613
        %v1618 = vsel %vm789, %v1610, 0
        %1620 = vmatpush.bf16.msra.mxu0 0
        %1621 = vmatpush.bf16.msra.mxu0 0
        %1622 = vmatpush.bf16.msra.mxu0 0
        %1623 = vmatpush.bf16.msra.mxu0 0
        %1624 = vmatpush.bf16.msra.mxu0 0
        %1625 = vmatpush.bf16.msra.mxu0 0
        %1626 = vmatpush.bf16.msra.mxu0 0
        %1627 = vmatpush.bf16.msra.mxu0 %v1615
        %1628 = vmatmul.bf16.gmra.mxu0 %v1618
        %v1629 = vpop.f32.mrf.mxu0
        %v1630 = vadd.f32 0.0, %v1629
        %v1631 = vpop.f32.mrf.mxu0
        %v1632 = vadd.f32 0.0, %v1631
        %1633 = vdwg.mxu0
        %v1634 = vpack.c.bf16 %v1632, %v1630
        %s1635 = scalar_lea.vmem [#allocation6], 64
        %v1636 = vld [vmem:[%s1635] sm:$0xf]
        %v1637 = vld [vmem:[%s1635 + $0x4] sm:$0xf]
        %v1638 = vld [vmem:[%s1635 + $0x8] sm:$0xf]
        %v1639 = vld [vmem:[%s1635 + $0xc] sm:$0xf]
        %v1640 = vld [vmem:[%s1635 + $0x10] sm:$0xf]
        %v1641 = vld [vmem:[%s1635 + $0x14] sm:$0xf]
        %v1642 = vld [vmem:[%s1635 + $0x18] sm:$0xf]
        %v1643 = vld [vmem:[%s1635 + $0x1c] sm:$0xf]
        %v1644 = vld [vmem:[%s1635 + $0x20] sm:$0xf]
        %v1645 = vld [vmem:[%s1635 + $0x24] sm:$0xf]
        %v1646 = vld [vmem:[%s1635 + $0x28] sm:$0xf]
        %v1647 = vld [vmem:[%s1635 + $0x2c] sm:$0xf]
        %v1648 = vld [vmem:[%s1635 + $0x30] sm:$0xf]
        %v1649 = vld [vmem:[%s1635 + $0x34] sm:$0xf]
        %v1650 = vld [vmem:[%s1635 + $0x38] sm:$0xf]
        %v1651 = vld [vmem:[%s1635 + $0x3c] sm:$0xf]
        %v1652 = vld [vmem:[%s7 + $0x7] sm:$0x1]
        %v1653 = vperm.slane %v1652, 0
        %v1670 = vunpack.c.l.b16 %v1636
        %v1671 = vunpack.c.l.b16 %v1637
        %v1672 = vunpack.c.l.b16 %v1638
        %v1673 = vunpack.c.l.b16 %v1639
        %v1674 = vunpack.c.l.b16 %v1640
        %v1675 = vunpack.c.l.b16 %v1641
        %v1676 = vunpack.c.l.b16 %v1642
        %v1677 = vunpack.c.l.b16 %v1643
        %v1678 = vunpack.c.l.b16 %v1644
        %v1679 = vunpack.c.l.b16 %v1645
        %v1680 = vunpack.c.l.b16 %v1646
        %v1681 = vunpack.c.l.b16 %v1647
        %v1682 = vunpack.c.l.b16 %v1648
        %v1683 = vunpack.c.l.b16 %v1649
        %v1684 = vunpack.c.l.b16 %v1650
        %v1685 = vunpack.c.l.b16 %v1651
        %v1686 = vpack.c.b16 %v1671, %v1670
        %v1687 = vpack.c.b16 %v1673, %v1672
        %v1688 = vpack.c.b16 %v1675, %v1674
        %v1689 = vpack.c.b16 %v1677, %v1676
        %v1690 = vpack.c.b16 %v1679, %v1678
        %v1691 = vpack.c.b16 %v1681, %v1680
        %v1692 = vpack.c.b16 %v1683, %v1682
        %v1693 = vpack.c.b16 %v1685, %v1684
        %1702 = vmatpush.bf16.msra.mxu0 %v1693
        %1703 = vmatpush.bf16.msra.mxu0 %v1692
        %1704 = vmatpush.bf16.msra.mxu0 %v1691
        %1705 = vmatpush.bf16.msra.mxu0 %v1690
        %1706 = vmatpush.bf16.msra.mxu0 %v1689
        %1707 = vmatpush.bf16.msra.mxu0 %v1688
        %1708 = vmatpush.bf16.msra.mxu0 %v1687
        %1709 = vmatpush.bf16.msra.mxu0 %v1686
        %1710 = vmatmul.bf16.gmra.mxu0 %v1634
        %v1711 = vpop.f32.mrf.mxu0
        %v1712 = vadd.f32 %v1653, %v1711
        %v1713 = vpop.f32.mrf.mxu0
        %v1714 = vadd.f32 %v1653, %v1713
        %1715 = vdwg.mxu0
        %v1716 = vadd.f32 %v1295, %v1712
        %v1717 = vadd.f32 %v1296, %v1714
        %v1718 = vld [vmem:[%s7 + $0xd] sm:$0x1]
        %v1719 = vld [vmem:[%s7 + $0xf] sm:$0x1]
        %1720 = vadd.xlane.f32.xlu0 %v1716
        %v1721 = vpop.xlane.xlu0 %1720
        %1722 = vadd.xlane.f32.xlu0 %v1717
        %v1723 = vpop.xlane.xlu0 %1722
        %v1724 = vmul.f32 %v1721, %v505
        %v1725 = vmul.f32 %v1723, %v505
        %v1726 = vsub.f32 %v1716, %v1724
        %v1727 = vsub.f32 %v1717, %v1725
        %v1728 = vmul.f32 %v1726, %v1726
        %v1729 = vmul.f32 %v1727, %v1727
        %1730 = vadd.xlane.f32.xlu0 %v1728
        %v1731 = vpop.xlane.xlu0 %1730
        %1732 = vadd.xlane.f32.xlu0 %v1729
        %v1733 = vpop.xlane.xlu0 %1732
        %v1734 = vmul.f32 %v1731, %v505
        %v1735 = vmul.f32 %v1733, %v505
        %v1736 = vadd.f32 %v1734, 1e-05
        %v1737 = vadd.f32 %v1735, 1e-05
        %v1738 = vrsqrt.pop %v1736
        %v1739 = vmul.f32 %v1738, %v1736
        %v1740 = vmul.f32 %v1739, %v1738
        %v1741 = vmul.f32 0.5, %v1740
        %v1742 = vsub.f32 1.5, %v1741
        %v1743 = vmul.f32 %v1738, %v1742
        %vm1744 = vweird.f32 %v1736
        %vm1745 = vweird.f32 %v1738
        %vm1746 = vmor %vm1744, %vm1745
        %v1747 = vsel %vm1746, %v1738, %v1743
        %v1748 = vrsqrt.pop %v1737
        %v1749 = vmul.f32 %v1748, %v1737
        %v1750 = vmul.f32 %v1749, %v1748
        %v1751 = vmul.f32 0.5, %v1750
        %v1752 = vsub.f32 1.5, %v1751
        %v1753 = vmul.f32 %v1748, %v1752
        %vm1754 = vweird.f32 %v1737
        %vm1755 = vweird.f32 %v1748
        %vm1756 = vmor %vm1754, %vm1755
        %v1757 = vsel %vm1756, %v1748, %v1753
        %v1758 = vmul.f32 %v1726, %v1747
        %v1759 = vmul.f32 %v1727, %v1757
        %v1760 = vperm.slane %v1718, 0
        %v1761 = vmul.f32 %v1758, %v1760
        %v1762 = vmul.f32 %v1759, %v1760
        %v1763 = vperm.slane %v1719, 0
        %v1764 = vadd.f32 %v1761, %v1763
        %v1765 = vadd.f32 %v1762, %v1763
        %v1766 = vpack.c.bf16 %v1765, %v1764
        %s1767 = scalar_lea.vmem [#allocation8], 128
        %v1768 = vld [vmem:[%s1767] sm:$0xff]
        %v1769 = vld [vmem:[%s1767 + $0x8] sm:$0xff]
        %v1770 = vld [vmem:[%s1767 + $0x10] sm:$0xff]
        %v1771 = vld [vmem:[%s1767 + $0x18] sm:$0xff]
        %v1772 = vld [vmem:[%s1767 + $0x20] sm:$0xff]
        %v1773 = vld [vmem:[%s1767 + $0x28] sm:$0xff]
        %v1774 = vld [vmem:[%s1767 + $0x30] sm:$0xff]
        %v1775 = vld [vmem:[%s1767 + $0x38] sm:$0xff]
        %v1776 = vld [vmem:[%s1767 + $0x40] sm:$0xff]
        %v1777 = vld [vmem:[%s1767 + $0x48] sm:$0xff]
        %v1778 = vld [vmem:[%s1767 + $0x50] sm:$0xff]
        %v1779 = vld [vmem:[%s1767 + $0x58] sm:$0xff]
        %v1780 = vld [vmem:[%s1767 + $0x60] sm:$0xff]
        %v1781 = vld [vmem:[%s1767 + $0x68] sm:$0xff]
        %v1782 = vld [vmem:[%s1767 + $0x70] sm:$0xff]
        %v1783 = vld [vmem:[%s1767 + $0x78] sm:$0xff]
        %s1784 = scalar_lea.vmem %s7, 17
        %v1785 = vld [vmem:[%s1784] ss:$2 sm:$0x3]
        %v1787 = vperm.slane %v1785, 0
        %v1788 = vperm.slane %v1785, 1
        %v1807 = vunpack.c.l.b16 %v1768
        %v1808 = vunpack.c.h.b16 %v1768
        %v1809 = vunpack.c.l.b16 %v1769
        %v1810 = vunpack.c.h.b16 %v1769
        %v1811 = vunpack.c.l.b16 %v1770
        %v1812 = vunpack.c.h.b16 %v1770
        %v1813 = vunpack.c.l.b16 %v1771
        %v1814 = vunpack.c.h.b16 %v1771
        %v1815 = vunpack.c.l.b16 %v1772
        %v1816 = vunpack.c.h.b16 %v1772
        %v1817 = vunpack.c.l.b16 %v1773
        %v1818 = vunpack.c.h.b16 %v1773
        %v1819 = vunpack.c.l.b16 %v1774
        %v1820 = vunpack.c.h.b16 %v1774
        %v1821 = vunpack.c.l.b16 %v1775
        %v1822 = vunpack.c.h.b16 %v1775
        %v1823 = vunpack.c.l.b16 %v1776
        %v1824 = vunpack.c.h.b16 %v1776
        %v1825 = vunpack.c.l.b16 %v1777
        %v1826 = vunpack.c.h.b16 %v1777
        %v1827 = vunpack.c.l.b16 %v1778
        %v1828 = vunpack.c.h.b16 %v1778
        %v1829 = vunpack.c.l.b16 %v1779
        %v1830 = vunpack.c.h.b16 %v1779
        %v1831 = vunpack.c.l.b16 %v1780
        %v1832 = vunpack.c.h.b16 %v1780
        %v1833 = vunpack.c.l.b16 %v1781
        %v1834 = vunpack.c.h.b16 %v1781
        %v1835 = vunpack.c.l.b16 %v1782
        %v1836 = vunpack.c.h.b16 %v1782
        %v1837 = vunpack.c.l.b16 %v1783
        %v1838 = vunpack.c.h.b16 %v1783
        %v1839 = vpack.c.b16 %v1809, %v1807
        %v1840 = vpack.c.b16 %v1810, %v1808
        %v1841 = vpack.c.b16 %v1813, %v1811
        %v1842 = vpack.c.b16 %v1814, %v1812
        %v1843 = vpack.c.b16 %v1817, %v1815
        %v1844 = vpack.c.b16 %v1818, %v1816
        %v1845 = vpack.c.b16 %v1821, %v1819
        %v1846 = vpack.c.b16 %v1822, %v1820
        %v1847 = vpack.c.b16 %v1825, %v1823
        %v1848 = vpack.c.b16 %v1826, %v1824
        %v1849 = vpack.c.b16 %v1829, %v1827
        %v1850 = vpack.c.b16 %v1830, %v1828
        %v1851 = vpack.c.b16 %v1833, %v1831
        %v1852 = vpack.c.b16 %v1834, %v1832
        %v1853 = vpack.c.b16 %v1837, %v1835
        %v1854 = vpack.c.b16 %v1838, %v1836
        %1871 = vmatpush.bf16.msra.mxu0 %v1853
        %1872 = vmatpush.bf16.msra.mxu0 %v1851
        %1873 = vmatpush.bf16.msra.mxu0 %v1849
        %1874 = vmatpush.bf16.msra.mxu0 %v1847
        %1875 = vmatpush.bf16.msra.mxu0 %v1845
        %1876 = vmatpush.bf16.msra.mxu0 %v1843
        %1877 = vmatpush.bf16.msra.mxu0 %v1841
        %1878 = vmatpush.bf16.msra.mxu0 %v1839
        %1879 = vmatmul.bf16.gmra.mxu0 %v1766
        %v1880 = vpop.f32.mrf.mxu0
        %v1881 = vadd.f32 %v1787, %v1880
        %v1882 = vpop.f32.mrf.mxu0
        %v1883 = vadd.f32 %v1787, %v1882
        %1884 = vdwg.mxu0
        %1885 = vmatpush.bf16.msra.mxu0 %v1854
        %1886 = vmatpush.bf16.msra.mxu0 %v1852
        %1887 = vmatpush.bf16.msra.mxu0 %v1850
        %1888 = vmatpush.bf16.msra.mxu0 %v1848
        %1889 = vmatpush.bf16.msra.mxu0 %v1846
        %1890 = vmatpush.bf16.msra.mxu0 %v1844
        %1891 = vmatpush.bf16.msra.mxu0 %v1842
        %1892 = vmatpush.bf16.msra.mxu0 %v1840
        %1893 = vmatmul.bf16.gmra.mxu0 %v1766
        %v1894 = vpop.f32.mrf.mxu0
        %v1895 = vadd.f32 %v1788, %v1894
        %v1896 = vpop.f32.mrf.mxu0
        %v1897 = vadd.f32 %v1788, %v1896
        %1898 = vdwg.mxu0
        %v1899 = vmul.f32 %v1881, %v1881
        %v1900 = vmul.f32 %v1895, %v1895
        %v1901 = vmul.f32 %v1883, %v1883
        %v1902 = vmul.f32 %v1897, %v1897
        %v1903 = vmul.f32 %v1881, %v1899
        %v1904 = vmul.f32 %v1895, %v1900
        %v1905 = vmul.f32 %v1883, %v1901
        %v1906 = vmul.f32 %v1897, %v1902
        %v1907 = vmul.f32 %v1903, 0.044715
        %v1908 = vmul.f32 %v1904, 0.044715
        %v1909 = vmul.f32 %v1905, 0.044715
        %v1910 = vmul.f32 %v1906, 0.044715
        %v1911 = vadd.f32 %v1881, %v1907
        %v1912 = vadd.f32 %v1895, %v1908
        %v1913 = vadd.f32 %v1883, %v1909
        %v1914 = vadd.f32 %v1897, %v1910
        %v1915 = vmul.f32 %v1911, 0.7978846
        %v1916 = vmul.f32 %v1912, 0.7978846
        %v1917 = vmul.f32 %v1913, 0.7978846
        %v1918 = vmul.f32 %v1914, 0.7978846
        %v1919 = vtanh.pop %v1915
        %v1920 = vtanh.pop %v1916
        %v1921 = vtanh.pop %v1917
        %v1922 = vtanh.pop %v1918
        %v1923 = vadd.f32 %v1919, 1.0
        %v1924 = vadd.f32 %v1920, 1.0
        %v1925 = vadd.f32 %v1921, 1.0
        %v1926 = vadd.f32 %v1922, 1.0
        %v1927 = vmul.f32 %v1923, 0.5
        %v1928 = vmul.f32 %v1924, 0.5
        %v1929 = vmul.f32 %v1925, 0.5
        %v1930 = vmul.f32 %v1926, 0.5
        %v1931 = vmul.f32 %v1881, %v1927
        %v1932 = vmul.f32 %v1895, %v1928
        %v1933 = vmul.f32 %v1883, %v1929
        %v1934 = vmul.f32 %v1897, %v1930
        %v1935 = vpack.c.bf16 %v1933, %v1931
        %v1936 = vpack.c.bf16 %v1934, %v1932
        %s1937 = scalar_lea.vmem [#allocation9], 128
        %v1938 = vld [vmem:[%s1937] sm:$0xf]
        %v1939 = vld [vmem:[%s1937 + $0x4] sm:$0xf]
        %v1940 = vld [vmem:[%s1937 + $0x8] sm:$0xf]
        %v1941 = vld [vmem:[%s1937 + $0xc] sm:$0xf]
        %v1942 = vld [vmem:[%s1937 + $0x10] sm:$0xf]
        %v1943 = vld [vmem:[%s1937 + $0x14] sm:$0xf]
        %v1944 = vld [vmem:[%s1937 + $0x18] sm:$0xf]
        %v1945 = vld [vmem:[%s1937 + $0x1c] sm:$0xf]
        %v1946 = vld [vmem:[%s1937 + $0x20] sm:$0xf]
        %v1947 = vld [vmem:[%s1937 + $0x24] sm:$0xf]
        %v1948 = vld [vmem:[%s1937 + $0x28] sm:$0xf]
        %v1949 = vld [vmem:[%s1937 + $0x2c] sm:$0xf]
        %v1950 = vld [vmem:[%s1937 + $0x30] sm:$0xf]
        %v1951 = vld [vmem:[%s1937 + $0x34] sm:$0xf]
        %v1952 = vld [vmem:[%s1937 + $0x38] sm:$0xf]
        %v1953 = vld [vmem:[%s1937 + $0x3c] sm:$0xf]
        %v1954 = vld [vmem:[%s1937 + $0x40] sm:$0xf]
        %v1955 = vld [vmem:[%s1937 + $0x44] sm:$0xf]
        %v1956 = vld [vmem:[%s1937 + $0x48] sm:$0xf]
        %v1957 = vld [vmem:[%s1937 + $0x4c] sm:$0xf]
        %v1958 = vld [vmem:[%s1937 + $0x50] sm:$0xf]
        %v1959 = vld [vmem:[%s1937 + $0x54] sm:$0xf]
        %v1960 = vld [vmem:[%s1937 + $0x58] sm:$0xf]
        %v1961 = vld [vmem:[%s1937 + $0x5c] sm:$0xf]
        %v1962 = vld [vmem:[%s1937 + $0x60] sm:$0xf]
        %v1963 = vld [vmem:[%s1937 + $0x64] sm:$0xf]
        %v1964 = vld [vmem:[%s1937 + $0x68] sm:$0xf]
        %v1965 = vld [vmem:[%s1937 + $0x6c] sm:$0xf]
        %v1966 = vld [vmem:[%s1937 + $0x70] sm:$0xf]
        %v1967 = vld [vmem:[%s1937 + $0x74] sm:$0xf]
        %v1968 = vld [vmem:[%s1937 + $0x78] sm:$0xf]
        %v1969 = vld [vmem:[%s1937 + $0x7c] sm:$0xf]
        %v1970 = vld [vmem:[%s7 + $0x15] sm:$0x1]
        %v1971 = vperm.slane %v1970, 0
        %v2004 = vunpack.c.l.b16 %v1938
        %v2005 = vunpack.c.l.b16 %v1939
        %v2006 = vunpack.c.l.b16 %v1940
        %v2007 = vunpack.c.l.b16 %v1941
        %v2008 = vunpack.c.l.b16 %v1942
        %v2009 = vunpack.c.l.b16 %v1943
        %v2010 = vunpack.c.l.b16 %v1944
        %v2011 = vunpack.c.l.b16 %v1945
        %v2012 = vunpack.c.l.b16 %v1946
        %v2013 = vunpack.c.l.b16 %v1947
        %v2014 = vunpack.c.l.b16 %v1948
        %v2015 = vunpack.c.l.b16 %v1949
        %v2016 = vunpack.c.l.b16 %v1950
        %v2017 = vunpack.c.l.b16 %v1951
        %v2018 = vunpack.c.l.b16 %v1952
        %v2019 = vunpack.c.l.b16 %v1953
        %v2020 = vunpack.c.l.b16 %v1954
        %v2021 = vunpack.c.l.b16 %v1955
        %v2022 = vunpack.c.l.b16 %v1956
        %v2023 = vunpack.c.l.b16 %v1957
        %v2024 = vunpack.c.l.b16 %v1958
        %v2025 = vunpack.c.l.b16 %v1959
        %v2026 = vunpack.c.l.b16 %v1960
        %v2027 = vunpack.c.l.b16 %v1961
        %v2028 = vunpack.c.l.b16 %v1962
        %v2029 = vunpack.c.l.b16 %v1963
        %v2030 = vunpack.c.l.b16 %v1964
        %v2031 = vunpack.c.l.b16 %v1965
        %v2032 = vunpack.c.l.b16 %v1966
        %v2033 = vunpack.c.l.b16 %v1967
        %v2034 = vunpack.c.l.b16 %v1968
        %v2035 = vunpack.c.l.b16 %v1969
        %v2036 = vpack.c.b16 %v2005, %v2004
        %v2037 = vpack.c.b16 %v2007, %v2006
        %v2038 = vpack.c.b16 %v2009, %v2008
        %v2039 = vpack.c.b16 %v2011, %v2010
        %v2040 = vpack.c.b16 %v2013, %v2012
        %v2041 = vpack.c.b16 %v2015, %v2014
        %v2042 = vpack.c.b16 %v2017, %v2016
        %v2043 = vpack.c.b16 %v2019, %v2018
        %v2044 = vpack.c.b16 %v2021, %v2020
        %v2045 = vpack.c.b16 %v2023, %v2022
        %v2046 = vpack.c.b16 %v2025, %v2024
        %v2047 = vpack.c.b16 %v2027, %v2026
        %v2048 = vpack.c.b16 %v2029, %v2028
        %v2049 = vpack.c.b16 %v2031, %v2030
        %v2050 = vpack.c.b16 %v2033, %v2032
        %v2051 = vpack.c.b16 %v2035, %v2034
        %2068 = vmatpush.bf16.msra.mxu0 %v2043
        %2069 = vmatpush.bf16.msra.mxu0 %v2042
        %2070 = vmatpush.bf16.msra.mxu0 %v2041
        %2071 = vmatpush.bf16.msra.mxu0 %v2040
        %2072 = vmatpush.bf16.msra.mxu0 %v2039
        %2073 = vmatpush.bf16.msra.mxu0 %v2038
        %2074 = vmatpush.bf16.msra.mxu0 %v2037
        %2075 = vmatpush.bf16.msra.mxu0 %v2036
        %2076 = vmatmul.bf16.gmra.mxu0 %v1935
        %v2077 = vpop.f32.mrf.mxu0
        %v2078 = vadd.f32 %v1971, %v2077
        %v2079 = vpop.f32.mrf.mxu0
        %v2080 = vadd.f32 %v1971, %v2079
        %2081 = vdwg.mxu0
        %2082 = vmatpush.bf16.msra.mxu0 %v2051
        %2083 = vmatpush.bf16.msra.mxu0 %v2050
        %2084 = vmatpush.bf16.msra.mxu0 %v2049
        %2085 = vmatpush.bf16.msra.mxu0 %v2048
        %2086 = vmatpush.bf16.msra.mxu0 %v2047
        %2087 = vmatpush.bf16.msra.mxu0 %v2046
        %2088 = vmatpush.bf16.msra.mxu0 %v2045
        %2089 = vmatpush.bf16.msra.mxu0 %v2044
        %2090 = vmatmul.bf16.gmra.mxu0 %v1936
        %v2091 = vpop.f32.mrf.mxu0
        %v2092 = vadd.f32 %v2078, %v2091
        %v2093 = vpop.f32.mrf.mxu0
        %v2094 = vadd.f32 %v2080, %v2093
        %2095 = vdwg.mxu0
        %v2096 = vadd.f32 %v1716, %v2092
        %v2097 = vadd.f32 %v1717, %v2094
        %2098 = vst [vmem:[%s344] sm:$0xff] %v2096
        %2099 = vst [vmem:[%s344 + $0x8] sm:$0xff] %v2097
        %s2100 = sand.u32 %s190, 1
        %s2101 = sand.u32 %s190, 1
        %s2102 = smul.addr %s2101, 16
        %s2103 = scalar_lea.vmem [#allocation11], %s2102
        // Predicated region
        $region65: #{xeus_forward.1} parent=47 // pred_check
          %p2104 = pneg %p200
        $region66: #{xeus_forward.1} parent=47 // pred_check_branch
          %2106 = sbr.rel (%p2104) target = $region68
        $region67: #{xeus_forward.1} parent=47 // pred_region
          %s2107 = smul.addr %s30, 8
          %s2108 = scalar_lea.vmem %s8, %s2107
          // Predicated region
          $region69: #{xeus_forward.1} parent=67 // pred_check
            _
          $region70: #{xeus_forward.1} parent=67 // pred_check_branch
            %2110 = sbr.rel (0) target = $region72
          $region71: #{xeus_forward.1} parent=67 // pred_region
            // Predicated region
            $region73: #{xeus_forward.1} parent=71 // pred_check
              _
            $region74: #{xeus_forward.1} parent=71 // pred_check_branch
              %2112 = sbr.rel (0) target = $region76
            $region75: #{xeus_forward.1} parent=71 // pred_region
              // Predicated region
              $region88: #{xeus_forward.1} parent=75 // pred_check
                _
              $region89: #{xeus_forward.1} parent=75 // pred_check_branch
                %2130 = sbr.rel (0) target = $region91
              $region90: #{xeus_forward.1} parent=75 // pred_region
                loop: start=0, step=1, limit=1
                $region92: #{xeus_forward.1} parent=90 // loop_pre_header
                  _
                $region93: #{xeus_forward.1} parent=90 // loop_header
                  %s2132 = sphi 0, %s2136
                  %p2133 = scmp.ge.s32.totalorder %s2132, 1
                  %s2137 = sphi %s2103, %s2103
                  %s2138 = sphi %s2108, %s2108
                $region94: #{xeus_forward.1} parent=90 // loop_header_branch
                  %2135 = sbr.rel (%p2133) target = $region98
                $region95: #{xeus_forward.1} parent=90 // loop_body
                  %v2139 = vld [vmem:[%s2137] sm:$0xff]
                  %2140 = vst [vmem:[%s2138] sm:$0xff] %v2139
                  %v2141 = vld [vmem:[%s2137 + $0x8] sm:$0xff]
                  %2142 = vst [vmem:[%s2138 + $0x10] sm:$0xff] %v2141
                $region96: #{xeus_forward.1} parent=90 // loop_footer
                  %s2136 = sadd.s32 1, %s2132
                $region97: #{xeus_forward.1} parent=90 // loop_footer_branch
                  %2131 = sbr.rel target = $region93
                $region98: #{xeus_forward.1} parent=90 // loop_exit
                  _
              $region91: #{xeus_forward.1} parent=75 // pred_fallthru
                _
              // Predicated region
              $region99: #{xeus_forward.1} parent=75 // pred_check
                _
              $region100: #{xeus_forward.1} parent=75 // pred_check_branch
                %2144 = sbr.rel target = $region102
              $region101: #{xeus_forward.1} parent=75 // pred_region
                _
              $region102: #{xeus_forward.1} parent=75 // pred_fallthru
                _
            $region76: #{xeus_forward.1} parent=71 // pred_fallthru
              _
            // Predicated region
            $region77: #{xeus_forward.1} parent=71 // pred_check
              _
            $region78: #{xeus_forward.1} parent=71 // pred_check_branch
              %2114 = sbr.rel target = $region80
            $region79: #{xeus_forward.1} parent=71 // pred_region
              %s2116 = ssub.s32 256, 1
              loop: start=0, step=1, limit=1
              $region81: #{xeus_forward.1} parent=79 // loop_pre_header
                _
              $region82: #{xeus_forward.1} parent=79 // loop_header
                %s2118 = sphi 0, %s2122
                %p2119 = scmp.ge.s32.totalorder %s2118, 1
                %s2123 = sphi %s2103, %s2103
                %s2124 = sphi %s2108, %s2108
              $region83: #{xeus_forward.1} parent=79 // loop_header_branch
                %2121 = sbr.rel (%p2119) target = $region87
              $region84: #{xeus_forward.1} parent=79 // loop_body
                %v2125 = vld [vmem:[%s2123] sm:%s2116]
                %2126 = vst [vmem:[%s2124] sm:%s2116] %v2125
                %v2127 = vld [vmem:[%s2123 + $0x8] sm:%s2116]
                %2128 = vst [vmem:[%s2124 + $0x10] sm:%s2116] %v2127
              $region85: #{xeus_forward.1} parent=79 // loop_footer
                %s2122 = sadd.s32 1, %s2118
              $region86: #{xeus_forward.1} parent=79 // loop_footer_branch
                %2117 = sbr.rel target = $region82
              $region87: #{xeus_forward.1} parent=79 // loop_exit
                _
            $region80: #{xeus_forward.1} parent=71 // pred_fallthru
              _
          $region72: #{xeus_forward.1} parent=67 // pred_fallthru
            _
          %2145 = vnop
        $region68: #{xeus_forward.1} parent=47 // pred_fallthru
          _
      $region48: #{xeus_forward.1} parent=5 // pred_fallthru
        _
      %p2146 = scmp.le.s32.totalorder 2, %s25
      // Predicated region
      $region103: #{xeus_forward.1} parent=5 // pred_check
        %p2147 = pneg %p2146
      $region104: #{xeus_forward.1} parent=5 // pred_check_branch
        %2149 = sbr.rel (%p2147) target = $region106
      $region105: #{xeus_forward.1} parent=5 // pred_region
        %s2150 = ssub.s32 %s25, 2
        // Predicated region
        $region107: #{xeus_forward.1} parent=105 // pred_check
          %p2151 = pneg %p206
        $region108: #{xeus_forward.1} parent=105 // pred_check_branch
          %2153 = sbr.rel (%p2151) target = $region110
        $region109: #{xeus_forward.1} parent=105 // pred_region
          %s2154 = sand.u32 %s191, 1
          %s2155 = sand.u32 %s191, 1
          %s2156 = smul.addr %s2155, 16
          %s2157 = scalar_lea.vmem [#allocation11], %s2156
        $region110: #{xeus_forward.1} parent=105 // pred_fallthru
          _
      $region106: #{xeus_forward.1} parent=5 // pred_fallthru
        _
    $region6: #{xeus_forward.1} parent=1 // loop_footer
      %s29 = sadd.s32 1, %s25
    $region7: #{xeus_forward.1} parent=1 // loop_footer_branch
      %24 = sbr.rel target = $region3
    $region8: #{xeus_forward.1} parent=1 // loop_exit
      _
    %2158 = vsyncpa [#allocation5], 1
    %s2159 = scalar_lea.sflag [#allocation5], 1
    %2160 = vsyncpa %s2159, 1
    %2161 = vsyncpa [#allocation7], 1
    %2162 = vsyncpa [#allocation10], 1

</llo_original>
